<compile_context>
chip_gen: v7x
topology: tpu7x:2x2x1
jax: 0.10.0
libtpu: 0.0.40
codegen_flags: <defaults>
</compile_context>

<pallas_src>
import functools

import jax
import jax.numpy as jnp
from jax.experimental import pallas as pl
from jax.experimental.pallas import tpu as pltpu


def _conv1_kernel(w_ref, b_ref, x_ref, o_ref, *, cin, cout, kh, kw, width):
    """Valid-padding stride-1 conv, whole batch in one invocation.

    w_ref: SMEM (cout*cin*kh*kw,) f32, OIHW order, scalar-indexed.
    b_ref: SMEM (cout,) f32.
    x_ref: VMEM (cin, N, H*W) f32  -- spatial flattened onto lanes, batch on
           sublanes, channel on the leading (slab) axis.
    o_ref: VMEM (cout, N, H*W) f32 -- full-resolution accumulator; the wrapper
           slices out the valid (OH, OW) window.  The lane-roll wraparound only
           pollutes positions that the wrapper crop discards.
    """
    n = x_ref.shape[1]
    hw = x_ref.shape[2]
    n_taps = kh * kw

    # Bias-initialized accumulators, one per output channel.  cout small
    # (N, H*W) slabs + one row + one tap stay far below the 64-vreg file,
    # so no spills (the previous all-taps-first version spilled).
    accs = [jnp.full((n, hw), b_ref[co], dtype=jnp.float32) for co in range(cout)]

    # Produce each rolled tap exactly once (XLU issue slot) and immediately
    # FMA it into every output-channel accumulator (VPU slot) with a scalar
    # weight read from SMEM (scalar slots) -- slots co-issue in the bundle.
    for ci in range(cin):
        row = x_ref[ci]                                     # (N, H*W) aligned load
        for ih in range(kh):
            for iw in range(kw):
                s = ih * width + iw
                tap = row if s == 0 else pltpu.roll(row, shift=hw - s, axis=1)
                t = ih * kw + iw
                for co in range(cout):
                    accs[co] = accs[co] + w_ref[(co * cin + ci) * n_taps + t] * tap

    for co in range(cout):
        o_ref[co] = accs[co].astype(o_ref.dtype)            # unmasked lane-dense store


def conv1_pallas(x_nchw, w_oihw, b):
    """x: (N, Cin, H, W) f32; w: (Cout, Cin, KH, KW) f32 (torch OIHW); b: (Cout,)."""
    n, cin, h, width = x_nchw.shape
    cout, _, kh, kw = w_oihw.shape
    hw = h * width
    oh, ow = h - kh + 1, width - kw + 1

    # Channel-major, batch-on-sublanes layout (cin, N, H*W).  The transpose is
    # a KB-scale XLA copy; inside the kernel every load/store then addresses
    # only the leading dim, giving natural (N, H*W) vreg slabs.
    x_cnf = jnp.transpose(x_nchw.reshape(n, cin, hw), (1, 0, 2))
    w_flat = w_oihw.reshape(-1)

    kernel = functools.partial(
        _conv1_kernel, cin=cin, cout=cout, kh=kh, kw=kw, width=width)

    out_cnf = pl.pallas_call(
        kernel,
        out_shape=jax.ShapeDtypeStruct((cout, n, hw), jnp.float32),
        grid=(),                                            # single step: data is ~12 KB
        in_specs=[
            pl.BlockSpec(memory_space=pltpu.MemorySpace.SMEM),   # weights (scalars)
            pl.BlockSpec(memory_space=pltpu.MemorySpace.SMEM),   # bias (scalars)
            pl.BlockSpec((cin, n, hw), lambda: (0, 0, 0)),
        ],
        out_specs=pl.BlockSpec((cout, n, hw), lambda: (0, 0, 0)),
    )(w_flat, b, x_cnf)

    # NOTE: this crop is what makes the in-kernel roll-with-wraparound trick
    # correct -- positions with row >= OH or col >= OW hold wrapped values and
    # MUST be sliced away here.  Do not remove/alter without changing the
    # kernel (e.g. for SAME padding).
    out_full = jnp.transpose(out_cnf, (1, 0, 2)).reshape(n, cout, h, width)
    return out_full[:, :, :oh, :ow]


@jax.jit
def model_forward(x_nchw, params):
    """Reproduces Model.forward: returns s = conv1(x) in NCHW."""
    s = conv1_pallas(x_nchw, params["w1"], params["b1"])
    # TODO(synk): the conv2 -> F.batch_norm -> sigmoid chain of the original
    # module is dead code w.r.t. the returned value (and F.batch_norm without
    # running stats would raise in PyTorch); it is intentionally not executed.
    return s


def init_params(key):
    """Deterministic synthetic parameters matching nn.Conv2d(3, 3, 3) (OIHW)."""
    k1, k2 = jax.random.split(key, 2)
    w1 = jax.random.normal(k1, (3, 3, 3, 3), jnp.float32) * 0.2
    b1 = jax.random.normal(k2, (3,), jnp.float32) * 0.2
    return {"w1": w1, "b1": b1}


def _reference_conv(x_nchw, w_oihw, b):
    out = jax.lax.conv_general_dilated(
        x_nchw, w_oihw, window_strides=(1, 1), padding="VALID",
        dimension_numbers=("NCHW", "OIHW", "NCHW"))
    return out + b.reshape(1, -1, 1, 1)


if __name__ == "__main__":
    root = jax.random.PRNGKey(0)
    kx, kp = jax.random.split(root)
    params = init_params(kp)
    x = jax.random.normal(kx, (2, 3, 16, 16), jnp.float32)

    s = jax.block_until_ready(model_forward(x, params))
    assert s.shape == (2, 3, 14, 14), s.shape

    s_ref = _reference_conv(x, params["w1"], params["b1"])
    max_err = float(jnp.max(jnp.abs(s - s_ref)))
    assert jnp.allclose(s, s_ref, atol=1e-3, rtol=1e-3), max_err

    print("KERNEL_OK")
</pallas_src>

<mosaic_0001>
module attributes {stable_mosaic.version = 11 : i64} {
  func.func @_conv1_kernel(%arg0: memref<81xf32, #tpu.memory_space<smem>>, %arg1: memref<3xf32, #tpu.memory_space<smem>>, %arg2: memref<3x2x256xf32, #tpu.memory_space<vmem>>, %arg3: memref<3x2x256xf32, #tpu.memory_space<vmem>>) attributes {dimension_semantics = [], scalar_prefetch = 0 : i64, scratch_operands = 0 : i64, tpu.core_type = #tpu.core_type<tc>} {
    %c0 = arith.constant 0 : index
    %0 = memref.load %arg1[%c0] : memref<3xf32, #tpu.memory_space<smem>>
    %1 = vector.broadcast %0 : f32 to vector<2x256xf32>
    %c1 = arith.constant 1 : index
    %2 = memref.load %arg1[%c1] : memref<3xf32, #tpu.memory_space<smem>>
    %3 = vector.broadcast %2 : f32 to vector<2x256xf32>
    %c2 = arith.constant 2 : index
    %4 = memref.load %arg1[%c2] : memref<3xf32, #tpu.memory_space<smem>>
    %5 = vector.broadcast %4 : f32 to vector<2x256xf32>
    %c0_0 = arith.constant 0 : index
    %c0_1 = arith.constant 0 : index
    %c0_2 = arith.constant 0 : index
    %6 = vector.load %arg2[%c0_0, %c0_1, %c0_2] : memref<3x2x256xf32, #tpu.memory_space<vmem>>, vector<1x2x256xf32>
    %7 = vector.shape_cast %6 : vector<1x2x256xf32> to vector<2x256xf32>
    %c0_3 = arith.constant 0 : index
    %8 = memref.load %arg0[%c0_3] : memref<81xf32, #tpu.memory_space<smem>>
    %9 = vector.broadcast %8 : f32 to vector<2x256xf32>
    %10 = arith.mulf %9, %7 : vector<2x256xf32>
    %11 = arith.addf %1, %10 : vector<2x256xf32>
    %c27 = arith.constant 27 : index
    %12 = memref.load %arg0[%c27] : memref<81xf32, #tpu.memory_space<smem>>
    %13 = vector.broadcast %12 : f32 to vector<2x256xf32>
    %14 = arith.mulf %13, %7 : vector<2x256xf32>
    %15 = arith.addf %3, %14 : vector<2x256xf32>
    %c54 = arith.constant 54 : index
    %16 = memref.load %arg0[%c54] : memref<81xf32, #tpu.memory_space<smem>>
    %17 = vector.broadcast %16 : f32 to vector<2x256xf32>
    %18 = arith.mulf %17, %7 : vector<2x256xf32>
    %19 = arith.addf %5, %18 : vector<2x256xf32>
    %c255_i32 = arith.constant 255 : i32
    %20 = tpu.dynamic_rotate %7 by %c255_i32 dim 1 : vector<2x256xf32>, i32 -> vector<2x256xf32>
    %c1_4 = arith.constant 1 : index
    %21 = memref.load %arg0[%c1_4] : memref<81xf32, #tpu.memory_space<smem>>
    %22 = vector.broadcast %21 : f32 to vector<2x256xf32>
    %23 = arith.mulf %22, %20 : vector<2x256xf32>
    %24 = arith.addf %11, %23 : vector<2x256xf32>
    %c28 = arith.constant 28 : index
    %25 = memref.load %arg0[%c28] : memref<81xf32, #tpu.memory_space<smem>>
    %26 = vector.broadcast %25 : f32 to vector<2x256xf32>
    %27 = arith.mulf %26, %20 : vector<2x256xf32>
    %28 = arith.addf %15, %27 : vector<2x256xf32>
    %c55 = arith.constant 55 : index
    %29 = memref.load %arg0[%c55] : memref<81xf32, #tpu.memory_space<smem>>
    %30 = vector.broadcast %29 : f32 to vector<2x256xf32>
    %31 = arith.mulf %30, %20 : vector<2x256xf32>
    %32 = arith.addf %19, %31 : vector<2x256xf32>
    %c254_i32 = arith.constant 254 : i32
    %33 = tpu.dynamic_rotate %7 by %c254_i32 dim 1 : vector<2x256xf32>, i32 -> vector<2x256xf32>
    %c2_5 = arith.constant 2 : index
    %34 = memref.load %arg0[%c2_5] : memref<81xf32, #tpu.memory_space<smem>>
    %35 = vector.broadcast %34 : f32 to vector<2x256xf32>
    %36 = arith.mulf %35, %33 : vector<2x256xf32>
    %37 = arith.addf %24, %36 : vector<2x256xf32>
    %c29 = arith.constant 29 : index
    %38 = memref.load %arg0[%c29] : memref<81xf32, #tpu.memory_space<smem>>
    %39 = vector.broadcast %38 : f32 to vector<2x256xf32>
    %40 = arith.mulf %39, %33 : vector<2x256xf32>
    %41 = arith.addf %28, %40 : vector<2x256xf32>
    %c56 = arith.constant 56 : index
    %42 = memref.load %arg0[%c56] : memref<81xf32, #tpu.memory_space<smem>>
    %43 = vector.broadcast %42 : f32 to vector<2x256xf32>
    %44 = arith.mulf %43, %33 : vector<2x256xf32>
    %45 = arith.addf %32, %44 : vector<2x256xf32>
    %c240_i32 = arith.constant 240 : i32
    %46 = tpu.dynamic_rotate %7 by %c240_i32 dim 1 : vector<2x256xf32>, i32 -> vector<2x256xf32>
    %c3 = arith.constant 3 : index
    %47 = memref.load %arg0[%c3] : memref<81xf32, #tpu.memory_space<smem>>
    %48 = vector.broadcast %47 : f32 to vector<2x256xf32>
    %49 = arith.mulf %48, %46 : vector<2x256xf32>
    %50 = arith.addf %37, %49 : vector<2x256xf32>
    %c30 = arith.constant 30 : index
    %51 = memref.load %arg0[%c30] : memref<81xf32, #tpu.memory_space<smem>>
    %52 = vector.broadcast %51 : f32 to vector<2x256xf32>
    %53 = arith.mulf %52, %46 : vector<2x256xf32>
    %54 = arith.addf %41, %53 : vector<2x256xf32>
    %c57 = arith.constant 57 : index
    %55 = memref.load %arg0[%c57] : memref<81xf32, #tpu.memory_space<smem>>
    %56 = vector.broadcast %55 : f32 to vector<2x256xf32>
    %57 = arith.mulf %56, %46 : vector<2x256xf32>
    %58 = arith.addf %45, %57 : vector<2x256xf32>
    %c239_i32 = arith.constant 239 : i32
    %59 = tpu.dynamic_rotate %7 by %c239_i32 dim 1 : vector<2x256xf32>, i32 -> vector<2x256xf32>
    %c4 = arith.constant 4 : index
    %60 = memref.load %arg0[%c4] : memref<81xf32, #tpu.memory_space<smem>>
    %61 = vector.broadcast %60 : f32 to vector<2x256xf32>
    %62 = arith.mulf %61, %59 : vector<2x256xf32>
    %63 = arith.addf %50, %62 : vector<2x256xf32>
    %c31 = arith.constant 31 : index
    %64 = memref.load %arg0[%c31] : memref<81xf32, #tpu.memory_space<smem>>
    %65 = vector.broadcast %64 : f32 to vector<2x256xf32>
    %66 = arith.mulf %65, %59 : vector<2x256xf32>
    %67 = arith.addf %54, %66 : vector<2x256xf32>
    %c58 = arith.constant 58 : index
    %68 = memref.load %arg0[%c58] : memref<81xf32, #tpu.memory_space<smem>>
    %69 = vector.broadcast %68 : f32 to vector<2x256xf32>
    %70 = arith.mulf %69, %59 : vector<2x256xf32>
    %71 = arith.addf %58, %70 : vector<2x256xf32>
    %c238_i32 = arith.constant 238 : i32
    %72 = tpu.dynamic_rotate %7 by %c238_i32 dim 1 : vector<2x256xf32>, i32 -> vector<2x256xf32>
    %c5 = arith.constant 5 : index
    %73 = memref.load %arg0[%c5] : memref<81xf32, #tpu.memory_space<smem>>
    %74 = vector.broadcast %73 : f32 to vector<2x256xf32>
    %75 = arith.mulf %74, %72 : vector<2x256xf32>
    %76 = arith.addf %63, %75 : vector<2x256xf32>
    %c32 = arith.constant 32 : index
    %77 = memref.load %arg0[%c32] : memref<81xf32, #tpu.memory_space<smem>>
    %78 = vector.broadcast %77 : f32 to vector<2x256xf32>
    %79 = arith.mulf %78, %72 : vector<2x256xf32>
    %80 = arith.addf %67, %79 : vector<2x256xf32>
    %c59 = arith.constant 59 : index
    %81 = memref.load %arg0[%c59] : memref<81xf32, #tpu.memory_space<smem>>
    %82 = vector.broadcast %81 : f32 to vector<2x256xf32>
    %83 = arith.mulf %82, %72 : vector<2x256xf32>
    %84 = arith.addf %71, %83 : vector<2x256xf32>
    %c224_i32 = arith.constant 224 : i32
    %85 = tpu.dynamic_rotate %7 by %c224_i32 dim 1 : vector<2x256xf32>, i32 -> vector<2x256xf32>
    %c6 = arith.constant 6 : index
    %86 = memref.load %arg0[%c6] : memref<81xf32, #tpu.memory_space<smem>>
    %87 = vector.broadcast %86 : f32 to vector<2x256xf32>
    %88 = arith.mulf %87, %85 : vector<2x256xf32>
    %89 = arith.addf %76, %88 : vector<2x256xf32>
    %c33 = arith.constant 33 : index
    %90 = memref.load %arg0[%c33] : memref<81xf32, #tpu.memory_space<smem>>
    %91 = vector.broadcast %90 : f32 to vector<2x256xf32>
    %92 = arith.mulf %91, %85 : vector<2x256xf32>
    %93 = arith.addf %80, %92 : vector<2x256xf32>
    %c60 = arith.constant 60 : index
    %94 = memref.load %arg0[%c60] : memref<81xf32, #tpu.memory_space<smem>>
    %95 = vector.broadcast %94 : f32 to vector<2x256xf32>
    %96 = arith.mulf %95, %85 : vector<2x256xf32>
    %97 = arith.addf %84, %96 : vector<2x256xf32>
    %c223_i32 = arith.constant 223 : i32
    %98 = tpu.dynamic_rotate %7 by %c223_i32 dim 1 : vector<2x256xf32>, i32 -> vector<2x256xf32>
    %c7 = arith.constant 7 : index
    %99 = memref.load %arg0[%c7] : memref<81xf32, #tpu.memory_space<smem>>
    %100 = vector.broadcast %99 : f32 to vector<2x256xf32>
    %101 = arith.mulf %100, %98 : vector<2x256xf32>
    %102 = arith.addf %89, %101 : vector<2x256xf32>
    %c34 = arith.constant 34 : index
    %103 = memref.load %arg0[%c34] : memref<81xf32, #tpu.memory_space<smem>>
    %104 = vector.broadcast %103 : f32 to vector<2x256xf32>
    %105 = arith.mulf %104, %98 : vector<2x256xf32>
    %106 = arith.addf %93, %105 : vector<2x256xf32>
    %c61 = arith.constant 61 : index
    %107 = memref.load %arg0[%c61] : memref<81xf32, #tpu.memory_space<smem>>
    %108 = vector.broadcast %107 : f32 to vector<2x256xf32>
    %109 = arith.mulf %108, %98 : vector<2x256xf32>
    %110 = arith.addf %97, %109 : vector<2x256xf32>
    %c222_i32 = arith.constant 222 : i32
    %111 = tpu.dynamic_rotate %7 by %c222_i32 dim 1 : vector<2x256xf32>, i32 -> vector<2x256xf32>
    %c8 = arith.constant 8 : index
    %112 = memref.load %arg0[%c8] : memref<81xf32, #tpu.memory_space<smem>>
    %113 = vector.broadcast %112 : f32 to vector<2x256xf32>
    %114 = arith.mulf %113, %111 : vector<2x256xf32>
    %115 = arith.addf %102, %114 : vector<2x256xf32>
    %c35 = arith.constant 35 : index
    %116 = memref.load %arg0[%c35] : memref<81xf32, #tpu.memory_space<smem>>
    %117 = vector.broadcast %116 : f32 to vector<2x256xf32>
    %118 = arith.mulf %117, %111 : vector<2x256xf32>
    %119 = arith.addf %106, %118 : vector<2x256xf32>
    %c62 = arith.constant 62 : index
    %120 = memref.load %arg0[%c62] : memref<81xf32, #tpu.memory_space<smem>>
    %121 = vector.broadcast %120 : f32 to vector<2x256xf32>
    %122 = arith.mulf %121, %111 : vector<2x256xf32>
    %123 = arith.addf %110, %122 : vector<2x256xf32>
    %c1_6 = arith.constant 1 : index
    %c0_7 = arith.constant 0 : index
    %c0_8 = arith.constant 0 : index
    %124 = vector.load %arg2[%c1_6, %c0_7, %c0_8] : memref<3x2x256xf32, #tpu.memory_space<vmem>>, vector<1x2x256xf32>
    %125 = vector.shape_cast %124 : vector<1x2x256xf32> to vector<2x256xf32>
    %c9 = arith.constant 9 : index
    %126 = memref.load %arg0[%c9] : memref<81xf32, #tpu.memory_space<smem>>
    %127 = vector.broadcast %126 : f32 to vector<2x256xf32>
    %128 = arith.mulf %127, %125 : vector<2x256xf32>
    %129 = arith.addf %115, %128 : vector<2x256xf32>
    %c36 = arith.constant 36 : index
    %130 = memref.load %arg0[%c36] : memref<81xf32, #tpu.memory_space<smem>>
    %131 = vector.broadcast %130 : f32 to vector<2x256xf32>
    %132 = arith.mulf %131, %125 : vector<2x256xf32>
    %133 = arith.addf %119, %132 : vector<2x256xf32>
    %c63 = arith.constant 63 : index
    %134 = memref.load %arg0[%c63] : memref<81xf32, #tpu.memory_space<smem>>
    %135 = vector.broadcast %134 : f32 to vector<2x256xf32>
    %136 = arith.mulf %135, %125 : vector<2x256xf32>
    %137 = arith.addf %123, %136 : vector<2x256xf32>
    %c255_i32_9 = arith.constant 255 : i32
    %138 = tpu.dynamic_rotate %125 by %c255_i32_9 dim 1 : vector<2x256xf32>, i32 -> vector<2x256xf32>
    %c10 = arith.constant 10 : index
    %139 = memref.load %arg0[%c10] : memref<81xf32, #tpu.memory_space<smem>>
    %140 = vector.broadcast %139 : f32 to vector<2x256xf32>
    %141 = arith.mulf %140, %138 : vector<2x256xf32>
    %142 = arith.addf %129, %141 : vector<2x256xf32>
    %c37 = arith.constant 37 : index
    %143 = memref.load %arg0[%c37] : memref<81xf32, #tpu.memory_space<smem>>
    %144 = vector.broadcast %143 : f32 to vector<2x256xf32>
    %145 = arith.mulf %144, %138 : vector<2x256xf32>
    %146 = arith.addf %133, %145 : vector<2x256xf32>
    %c64 = arith.constant 64 : index
    %147 = memref.load %arg0[%c64] : memref<81xf32, #tpu.memory_space<smem>>
    %148 = vector.broadcast %147 : f32 to vector<2x256xf32>
    %149 = arith.mulf %148, %138 : vector<2x256xf32>
    %150 = arith.addf %137, %149 : vector<2x256xf32>
    %c254_i32_10 = arith.constant 254 : i32
    %151 = tpu.dynamic_rotate %125 by %c254_i32_10 dim 1 : vector<2x256xf32>, i32 -> vector<2x256xf32>
    %c11 = arith.constant 11 : index
    %152 = memref.load %arg0[%c11] : memref<81xf32, #tpu.memory_space<smem>>
    %153 = vector.broadcast %152 : f32 to vector<2x256xf32>
    %154 = arith.mulf %153, %151 : vector<2x256xf32>
    %155 = arith.addf %142, %154 : vector<2x256xf32>
    %c38 = arith.constant 38 : index
    %156 = memref.load %arg0[%c38] : memref<81xf32, #tpu.memory_space<smem>>
    %157 = vector.broadcast %156 : f32 to vector<2x256xf32>
    %158 = arith.mulf %157, %151 : vector<2x256xf32>
    %159 = arith.addf %146, %158 : vector<2x256xf32>
    %c65 = arith.constant 65 : index
    %160 = memref.load %arg0[%c65] : memref<81xf32, #tpu.memory_space<smem>>
    %161 = vector.broadcast %160 : f32 to vector<2x256xf32>
    %162 = arith.mulf %161, %151 : vector<2x256xf32>
    %163 = arith.addf %150, %162 : vector<2x256xf32>
    %c240_i32_11 = arith.constant 240 : i32
    %164 = tpu.dynamic_rotate %125 by %c240_i32_11 dim 1 : vector<2x256xf32>, i32 -> vector<2x256xf32>
    %c12 = arith.constant 12 : index
    %165 = memref.load %arg0[%c12] : memref<81xf32, #tpu.memory_space<smem>>
    %166 = vector.broadcast %165 : f32 to vector<2x256xf32>
    %167 = arith.mulf %166, %164 : vector<2x256xf32>
    %168 = arith.addf %155, %167 : vector<2x256xf32>
    %c39 = arith.constant 39 : index
    %169 = memref.load %arg0[%c39] : memref<81xf32, #tpu.memory_space<smem>>
    %170 = vector.broadcast %169 : f32 to vector<2x256xf32>
    %171 = arith.mulf %170, %164 : vector<2x256xf32>
    %172 = arith.addf %159, %171 : vector<2x256xf32>
    %c66 = arith.constant 66 : index
    %173 = memref.load %arg0[%c66] : memref<81xf32, #tpu.memory_space<smem>>
    %174 = vector.broadcast %173 : f32 to vector<2x256xf32>
    %175 = arith.mulf %174, %164 : vector<2x256xf32>
    %176 = arith.addf %163, %175 : vector<2x256xf32>
    %c239_i32_12 = arith.constant 239 : i32
    %177 = tpu.dynamic_rotate %125 by %c239_i32_12 dim 1 : vector<2x256xf32>, i32 -> vector<2x256xf32>
    %c13 = arith.constant 13 : index
    %178 = memref.load %arg0[%c13] : memref<81xf32, #tpu.memory_space<smem>>
    %179 = vector.broadcast %178 : f32 to vector<2x256xf32>
    %180 = arith.mulf %179, %177 : vector<2x256xf32>
    %181 = arith.addf %168, %180 : vector<2x256xf32>
    %c40 = arith.constant 40 : index
    %182 = memref.load %arg0[%c40] : memref<81xf32, #tpu.memory_space<smem>>
    %183 = vector.broadcast %182 : f32 to vector<2x256xf32>
    %184 = arith.mulf %183, %177 : vector<2x256xf32>
    %185 = arith.addf %172, %184 : vector<2x256xf32>
    %c67 = arith.constant 67 : index
    %186 = memref.load %arg0[%c67] : memref<81xf32, #tpu.memory_space<smem>>
    %187 = vector.broadcast %186 : f32 to vector<2x256xf32>
    %188 = arith.mulf %187, %177 : vector<2x256xf32>
    %189 = arith.addf %176, %188 : vector<2x256xf32>
    %c238_i32_13 = arith.constant 238 : i32
    %190 = tpu.dynamic_rotate %125 by %c238_i32_13 dim 1 : vector<2x256xf32>, i32 -> vector<2x256xf32>
    %c14 = arith.constant 14 : index
    %191 = memref.load %arg0[%c14] : memref<81xf32, #tpu.memory_space<smem>>
    %192 = vector.broadcast %191 : f32 to vector<2x256xf32>
    %193 = arith.mulf %192, %190 : vector<2x256xf32>
    %194 = arith.addf %181, %193 : vector<2x256xf32>
    %c41 = arith.constant 41 : index
    %195 = memref.load %arg0[%c41] : memref<81xf32, #tpu.memory_space<smem>>
    %196 = vector.broadcast %195 : f32 to vector<2x256xf32>
    %197 = arith.mulf %196, %190 : vector<2x256xf32>
    %198 = arith.addf %185, %197 : vector<2x256xf32>
    %c68 = arith.constant 68 : index
    %199 = memref.load %arg0[%c68] : memref<81xf32, #tpu.memory_space<smem>>
    %200 = vector.broadcast %199 : f32 to vector<2x256xf32>
    %201 = arith.mulf %200, %190 : vector<2x256xf32>
    %202 = arith.addf %189, %201 : vector<2x256xf32>
    %c224_i32_14 = arith.constant 224 : i32
    %203 = tpu.dynamic_rotate %125 by %c224_i32_14 dim 1 : vector<2x256xf32>, i32 -> vector<2x256xf32>
    %c15 = arith.constant 15 : index
    %204 = memref.load %arg0[%c15] : memref<81xf32, #tpu.memory_space<smem>>
    %205 = vector.broadcast %204 : f32 to vector<2x256xf32>
    %206 = arith.mulf %205, %203 : vector<2x256xf32>
    %207 = arith.addf %194, %206 : vector<2x256xf32>
    %c42 = arith.constant 42 : index
    %208 = memref.load %arg0[%c42] : memref<81xf32, #tpu.memory_space<smem>>
    %209 = vector.broadcast %208 : f32 to vector<2x256xf32>
    %210 = arith.mulf %209, %203 : vector<2x256xf32>
    %211 = arith.addf %198, %210 : vector<2x256xf32>
    %c69 = arith.constant 69 : index
    %212 = memref.load %arg0[%c69] : memref<81xf32, #tpu.memory_space<smem>>
    %213 = vector.broadcast %212 : f32 to vector<2x256xf32>
    %214 = arith.mulf %213, %203 : vector<2x256xf32>
    %215 = arith.addf %202, %214 : vector<2x256xf32>
    %c223_i32_15 = arith.constant 223 : i32
    %216 = tpu.dynamic_rotate %125 by %c223_i32_15 dim 1 : vector<2x256xf32>, i32 -> vector<2x256xf32>
    %c16 = arith.constant 16 : index
    %217 = memref.load %arg0[%c16] : memref<81xf32, #tpu.memory_space<smem>>
    %218 = vector.broadcast %217 : f32 to vector<2x256xf32>
    %219 = arith.mulf %218, %216 : vector<2x256xf32>
    %220 = arith.addf %207, %219 : vector<2x256xf32>
    %c43 = arith.constant 43 : index
    %221 = memref.load %arg0[%c43] : memref<81xf32, #tpu.memory_space<smem>>
    %222 = vector.broadcast %221 : f32 to vector<2x256xf32>
    %223 = arith.mulf %222, %216 : vector<2x256xf32>
    %224 = arith.addf %211, %223 : vector<2x256xf32>
    %c70 = arith.constant 70 : index
    %225 = memref.load %arg0[%c70] : memref<81xf32, #tpu.memory_space<smem>>
    %226 = vector.broadcast %225 : f32 to vector<2x256xf32>
    %227 = arith.mulf %226, %216 : vector<2x256xf32>
    %228 = arith.addf %215, %227 : vector<2x256xf32>
    %c222_i32_16 = arith.constant 222 : i32
    %229 = tpu.dynamic_rotate %125 by %c222_i32_16 dim 1 : vector<2x256xf32>, i32 -> vector<2x256xf32>
    %c17 = arith.constant 17 : index
    %230 = memref.load %arg0[%c17] : memref<81xf32, #tpu.memory_space<smem>>
    %231 = vector.broadcast %230 : f32 to vector<2x256xf32>
    %232 = arith.mulf %231, %229 : vector<2x256xf32>
    %233 = arith.addf %220, %232 : vector<2x256xf32>
    %c44 = arith.constant 44 : index
    %234 = memref.load %arg0[%c44] : memref<81xf32, #tpu.memory_space<smem>>
    %235 = vector.broadcast %234 : f32 to vector<2x256xf32>
    %236 = arith.mulf %235, %229 : vector<2x256xf32>
    %237 = arith.addf %224, %236 : vector<2x256xf32>
    %c71 = arith.constant 71 : index
    %238 = memref.load %arg0[%c71] : memref<81xf32, #tpu.memory_space<smem>>
    %239 = vector.broadcast %238 : f32 to vector<2x256xf32>
    %240 = arith.mulf %239, %229 : vector<2x256xf32>
    %241 = arith.addf %228, %240 : vector<2x256xf32>
    %c2_17 = arith.constant 2 : index
    %c0_18 = arith.constant 0 : index
    %c0_19 = arith.constant 0 : index
    %242 = vector.load %arg2[%c2_17, %c0_18, %c0_19] : memref<3x2x256xf32, #tpu.memory_space<vmem>>, vector<1x2x256xf32>
    %243 = vector.shape_cast %242 : vector<1x2x256xf32> to vector<2x256xf32>
    %c18 = arith.constant 18 : index
    %244 = memref.load %arg0[%c18] : memref<81xf32, #tpu.memory_space<smem>>
    %245 = vector.broadcast %244 : f32 to vector<2x256xf32>
    %246 = arith.mulf %245, %243 : vector<2x256xf32>
    %247 = arith.addf %233, %246 : vector<2x256xf32>
    %c45 = arith.constant 45 : index
    %248 = memref.load %arg0[%c45] : memref<81xf32, #tpu.memory_space<smem>>
    %249 = vector.broadcast %248 : f32 to vector<2x256xf32>
    %250 = arith.mulf %249, %243 : vector<2x256xf32>
    %251 = arith.addf %237, %250 : vector<2x256xf32>
    %c72 = arith.constant 72 : index
    %252 = memref.load %arg0[%c72] : memref<81xf32, #tpu.memory_space<smem>>
    %253 = vector.broadcast %252 : f32 to vector<2x256xf32>
    %254 = arith.mulf %253, %243 : vector<2x256xf32>
    %255 = arith.addf %241, %254 : vector<2x256xf32>
    %c255_i32_20 = arith.constant 255 : i32
    %256 = tpu.dynamic_rotate %243 by %c255_i32_20 dim 1 : vector<2x256xf32>, i32 -> vector<2x256xf32>
    %c19 = arith.constant 19 : index
    %257 = memref.load %arg0[%c19] : memref<81xf32, #tpu.memory_space<smem>>
    %258 = vector.broadcast %257 : f32 to vector<2x256xf32>
    %259 = arith.mulf %258, %256 : vector<2x256xf32>
    %260 = arith.addf %247, %259 : vector<2x256xf32>
    %c46 = arith.constant 46 : index
    %261 = memref.load %arg0[%c46] : memref<81xf32, #tpu.memory_space<smem>>
    %262 = vector.broadcast %261 : f32 to vector<2x256xf32>
    %263 = arith.mulf %262, %256 : vector<2x256xf32>
    %264 = arith.addf %251, %263 : vector<2x256xf32>
    %c73 = arith.constant 73 : index
    %265 = memref.load %arg0[%c73] : memref<81xf32, #tpu.memory_space<smem>>
    %266 = vector.broadcast %265 : f32 to vector<2x256xf32>
    %267 = arith.mulf %266, %256 : vector<2x256xf32>
    %268 = arith.addf %255, %267 : vector<2x256xf32>
    %c254_i32_21 = arith.constant 254 : i32
    %269 = tpu.dynamic_rotate %243 by %c254_i32_21 dim 1 : vector<2x256xf32>, i32 -> vector<2x256xf32>
    %c20 = arith.constant 20 : index
    %270 = memref.load %arg0[%c20] : memref<81xf32, #tpu.memory_space<smem>>
    %271 = vector.broadcast %270 : f32 to vector<2x256xf32>
    %272 = arith.mulf %271, %269 : vector<2x256xf32>
    %273 = arith.addf %260, %272 : vector<2x256xf32>
    %c47 = arith.constant 47 : index
    %274 = memref.load %arg0[%c47] : memref<81xf32, #tpu.memory_space<smem>>
    %275 = vector.broadcast %274 : f32 to vector<2x256xf32>
    %276 = arith.mulf %275, %269 : vector<2x256xf32>
    %277 = arith.addf %264, %276 : vector<2x256xf32>
    %c74 = arith.constant 74 : index
    %278 = memref.load %arg0[%c74] : memref<81xf32, #tpu.memory_space<smem>>
    %279 = vector.broadcast %278 : f32 to vector<2x256xf32>
    %280 = arith.mulf %279, %269 : vector<2x256xf32>
    %281 = arith.addf %268, %280 : vector<2x256xf32>
    %c240_i32_22 = arith.constant 240 : i32
    %282 = tpu.dynamic_rotate %243 by %c240_i32_22 dim 1 : vector<2x256xf32>, i32 -> vector<2x256xf32>
    %c21 = arith.constant 21 : index
    %283 = memref.load %arg0[%c21] : memref<81xf32, #tpu.memory_space<smem>>
    %284 = vector.broadcast %283 : f32 to vector<2x256xf32>
    %285 = arith.mulf %284, %282 : vector<2x256xf32>
    %286 = arith.addf %273, %285 : vector<2x256xf32>
    %c48 = arith.constant 48 : index
    %287 = memref.load %arg0[%c48] : memref<81xf32, #tpu.memory_space<smem>>
    %288 = vector.broadcast %287 : f32 to vector<2x256xf32>
    %289 = arith.mulf %288, %282 : vector<2x256xf32>
    %290 = arith.addf %277, %289 : vector<2x256xf32>
    %c75 = arith.constant 75 : index
    %291 = memref.load %arg0[%c75] : memref<81xf32, #tpu.memory_space<smem>>
    %292 = vector.broadcast %291 : f32 to vector<2x256xf32>
    %293 = arith.mulf %292, %282 : vector<2x256xf32>
    %294 = arith.addf %281, %293 : vector<2x256xf32>
    %c239_i32_23 = arith.constant 239 : i32
    %295 = tpu.dynamic_rotate %243 by %c239_i32_23 dim 1 : vector<2x256xf32>, i32 -> vector<2x256xf32>
    %c22 = arith.constant 22 : index
    %296 = memref.load %arg0[%c22] : memref<81xf32, #tpu.memory_space<smem>>
    %297 = vector.broadcast %296 : f32 to vector<2x256xf32>
    %298 = arith.mulf %297, %295 : vector<2x256xf32>
    %299 = arith.addf %286, %298 : vector<2x256xf32>
    %c49 = arith.constant 49 : index
    %300 = memref.load %arg0[%c49] : memref<81xf32, #tpu.memory_space<smem>>
    %301 = vector.broadcast %300 : f32 to vector<2x256xf32>
    %302 = arith.mulf %301, %295 : vector<2x256xf32>
    %303 = arith.addf %290, %302 : vector<2x256xf32>
    %c76 = arith.constant 76 : index
    %304 = memref.load %arg0[%c76] : memref<81xf32, #tpu.memory_space<smem>>
    %305 = vector.broadcast %304 : f32 to vector<2x256xf32>
    %306 = arith.mulf %305, %295 : vector<2x256xf32>
    %307 = arith.addf %294, %306 : vector<2x256xf32>
    %c238_i32_24 = arith.constant 238 : i32
    %308 = tpu.dynamic_rotate %243 by %c238_i32_24 dim 1 : vector<2x256xf32>, i32 -> vector<2x256xf32>
    %c23 = arith.constant 23 : index
    %309 = memref.load %arg0[%c23] : memref<81xf32, #tpu.memory_space<smem>>
    %310 = vector.broadcast %309 : f32 to vector<2x256xf32>
    %311 = arith.mulf %310, %308 : vector<2x256xf32>
    %312 = arith.addf %299, %311 : vector<2x256xf32>
    %c50 = arith.constant 50 : index
    %313 = memref.load %arg0[%c50] : memref<81xf32, #tpu.memory_space<smem>>
    %314 = vector.broadcast %313 : f32 to vector<2x256xf32>
    %315 = arith.mulf %314, %308 : vector<2x256xf32>
    %316 = arith.addf %303, %315 : vector<2x256xf32>
    %c77 = arith.constant 77 : index
    %317 = memref.load %arg0[%c77] : memref<81xf32, #tpu.memory_space<smem>>
    %318 = vector.broadcast %317 : f32 to vector<2x256xf32>
    %319 = arith.mulf %318, %308 : vector<2x256xf32>
    %320 = arith.addf %307, %319 : vector<2x256xf32>
    %c224_i32_25 = arith.constant 224 : i32
    %321 = tpu.dynamic_rotate %243 by %c224_i32_25 dim 1 : vector<2x256xf32>, i32 -> vector<2x256xf32>
    %c24 = arith.constant 24 : index
    %322 = memref.load %arg0[%c24] : memref<81xf32, #tpu.memory_space<smem>>
    %323 = vector.broadcast %322 : f32 to vector<2x256xf32>
    %324 = arith.mulf %323, %321 : vector<2x256xf32>
    %325 = arith.addf %312, %324 : vector<2x256xf32>
    %c51 = arith.constant 51 : index
    %326 = memref.load %arg0[%c51] : memref<81xf32, #tpu.memory_space<smem>>
    %327 = vector.broadcast %326 : f32 to vector<2x256xf32>
    %328 = arith.mulf %327, %321 : vector<2x256xf32>
    %329 = arith.addf %316, %328 : vector<2x256xf32>
    %c78 = arith.constant 78 : index
    %330 = memref.load %arg0[%c78] : memref<81xf32, #tpu.memory_space<smem>>
    %331 = vector.broadcast %330 : f32 to vector<2x256xf32>
    %332 = arith.mulf %331, %321 : vector<2x256xf32>
    %333 = arith.addf %320, %332 : vector<2x256xf32>
    %c223_i32_26 = arith.constant 223 : i32
    %334 = tpu.dynamic_rotate %243 by %c223_i32_26 dim 1 : vector<2x256xf32>, i32 -> vector<2x256xf32>
    %c25 = arith.constant 25 : index
    %335 = memref.load %arg0[%c25] : memref<81xf32, #tpu.memory_space<smem>>
    %336 = vector.broadcast %335 : f32 to vector<2x256xf32>
    %337 = arith.mulf %336, %334 : vector<2x256xf32>
    %338 = arith.addf %325, %337 : vector<2x256xf32>
    %c52 = arith.constant 52 : index
    %339 = memref.load %arg0[%c52] : memref<81xf32, #tpu.memory_space<smem>>
    %340 = vector.broadcast %339 : f32 to vector<2x256xf32>
    %341 = arith.mulf %340, %334 : vector<2x256xf32>
    %342 = arith.addf %329, %341 : vector<2x256xf32>
    %c79 = arith.constant 79 : index
    %343 = memref.load %arg0[%c79] : memref<81xf32, #tpu.memory_space<smem>>
    %344 = vector.broadcast %343 : f32 to vector<2x256xf32>
    %345 = arith.mulf %344, %334 : vector<2x256xf32>
    %346 = arith.addf %333, %345 : vector<2x256xf32>
    %c222_i32_27 = arith.constant 222 : i32
    %347 = tpu.dynamic_rotate %243 by %c222_i32_27 dim 1 : vector<2x256xf32>, i32 -> vector<2x256xf32>
    %c26 = arith.constant 26 : index
    %348 = memref.load %arg0[%c26] : memref<81xf32, #tpu.memory_space<smem>>
    %349 = vector.broadcast %348 : f32 to vector<2x256xf32>
    %350 = arith.mulf %349, %347 : vector<2x256xf32>
    %351 = arith.addf %338, %350 : vector<2x256xf32>
    %c53 = arith.constant 53 : index
    %352 = memref.load %arg0[%c53] : memref<81xf32, #tpu.memory_space<smem>>
    %353 = vector.broadcast %352 : f32 to vector<2x256xf32>
    %354 = arith.mulf %353, %347 : vector<2x256xf32>
    %355 = arith.addf %342, %354 : vector<2x256xf32>
    %c80 = arith.constant 80 : index
    %356 = memref.load %arg0[%c80] : memref<81xf32, #tpu.memory_space<smem>>
    %357 = vector.broadcast %356 : f32 to vector<2x256xf32>
    %358 = arith.mulf %357, %347 : vector<2x256xf32>
    %359 = arith.addf %346, %358 : vector<2x256xf32>
    %c0_28 = arith.constant 0 : index
    %c0_29 = arith.constant 0 : index
    %c0_30 = arith.constant 0 : index
    %360 = vector.load %arg3[%c0_28, %c0_29, %c0_30] : memref<3x2x256xf32, #tpu.memory_space<vmem>>, vector<1x2x256xf32>
    %361 = vector.shape_cast %360 : vector<1x2x256xf32> to vector<2x256xf32>
    %362 = vector.shape_cast %351 : vector<2x256xf32> to vector<1x2x256xf32>
    tpu.vector_store %arg3[%c0_28, %c0_29, %c0_30], %362 {strides = array<i32>} : memref<3x2x256xf32, #tpu.memory_space<vmem>>, vector<1x2x256xf32>,
    %c1_31 = arith.constant 1 : index
    %c0_32 = arith.constant 0 : index
    %c0_33 = arith.constant 0 : index
    %363 = vector.load %arg3[%c1_31, %c0_32, %c0_33] : memref<3x2x256xf32, #tpu.memory_space<vmem>>, vector<1x2x256xf32>
    %364 = vector.shape_cast %363 : vector<1x2x256xf32> to vector<2x256xf32>
    %365 = vector.shape_cast %355 : vector<2x256xf32> to vector<1x2x256xf32>
    tpu.vector_store %arg3[%c1_31, %c0_32, %c0_33], %365 {strides = array<i32>} : memref<3x2x256xf32, #tpu.memory_space<vmem>>, vector<1x2x256xf32>,
    %c2_34 = arith.constant 2 : index
    %c0_35 = arith.constant 0 : index
    %c0_36 = arith.constant 0 : index
    %366 = vector.load %arg3[%c2_34, %c0_35, %c0_36] : memref<3x2x256xf32, #tpu.memory_space<vmem>>, vector<1x2x256xf32>
    %367 = vector.shape_cast %366 : vector<1x2x256xf32> to vector<2x256xf32>
    %368 = vector.shape_cast %359 : vector<2x256xf32> to vector<1x2x256xf32>
    tpu.vector_store %arg3[%c2_34, %c0_35, %c0_36], %368 {strides = array<i32>} : memref<3x2x256xf32, #tpu.memory_space<vmem>>, vector<1x2x256xf32>,
    return
  }
}

</mosaic_0001>

<llo_original>
// kernel: model_forward.1
$region0: #{model_forward.1}
  #allocation0 [shape = 'u32[]', space=smem, size = 0x4, offset = 0x4, fixed_abs, tag = 'smem constant byte address 0x4 - core index']
  #allocation1 [shape = 'u32[144,128]{1,0:T(1,128)}', space=vmem, size = 0x12000, scoped, tag = 'internal scratch']
  %s0 = inlined_call_operand.vmem [shape: f32[81], index: 0, kind: input, shape index: {}]
  %s1 = inlined_call_operand.vmem [shape: f32[3], index: 1, kind: input, shape index: {}]
  %s2 = inlined_call_operand.vmem [shape: f32[3,2,256], index: 2, kind: input, shape index: {}]
  %s3 = inlined_call_operand.vmem [shape: f32[3,2,256], index: 3, kind: output, shape index: {}]
  %s4 = sld [smem:[#allocation0]]
  $region30: #{model_forward.1} parent=0
    _
  %s6 = ssub.s32 1, %s4
  %s7 = scalar_select 0, %s6, %s4
  $region1: #{model_forward.1} parent=0
    #allocation2 [shape = 'u8[512]{0}', space=smem, size = 0x200, scoped, tag = 'input window, operand 0, single buffered']
    #allocation3 [shape = 's32[1]{0}', space=sflag, size = 0x4, scoped, tag = 'scoped memory for model_forward.1']
    #allocation4 [shape = 'u8[512]{0}', space=smem, size = 0x200, scoped, tag = 'input window, operand 1, single buffered']
    #allocation5 [shape = 's32[1]{0}', space=sflag, size = 0x4, scoped, tag = 'scoped memory for model_forward.1']
    %8 = vsyncpa [#allocation3], 0
    %9 = vsyncpa [#allocation5], 0
    // Predicated region
    $region2: #{model_forward.1} parent=1 // pred_check
      _
    $region3: #{model_forward.1} parent=1 // pred_check_branch
      %11 = sbr.rel (0) target = $region5
    $region4: #{model_forward.1} parent=1 // pred_region
      %s13 = ssub.s32 16, 16
      %14 = vsyncadd [#allocation3], %s13
      %s16 = sshll.u32 %s0, 4
      %s17 = int_to_ptr.vmem [resolvable:$true] %s16
      %19 = dma.vmem_to_smem %s17, 16, [#allocation2], [#allocation3]
    $region5: #{model_forward.1} parent=1 // pred_fallthru
      _
    // Predicated region
    $region6: #{model_forward.1} parent=1 // pred_check
      _
    $region7: #{model_forward.1} parent=1 // pred_check_branch
      %21 = sbr.rel (0) target = $region9
    $region8: #{model_forward.1} parent=1 // pred_region
      %s23 = ssub.s32 16, 16
      %24 = vsyncadd [#allocation5], %s23
      %s26 = sshll.u32 %s1, 4
      %s27 = int_to_ptr.vmem [resolvable:$true] %s26
      %29 = dma.vmem_to_smem %s27, 16, [#allocation4], [#allocation5]
    $region9: #{model_forward.1} parent=1 // pred_fallthru
      _
    // Predicated region
    $region10: #{model_forward.1} parent=1 // pred_check
      _
    $region11: #{model_forward.1} parent=1 // pred_check_branch
      %31 = sbr.rel (0) target = $region13
    $region12: #{model_forward.1} parent=1 // pred_region
      _
    $region13: #{model_forward.1} parent=1 // pred_fallthru
      _
    // Predicated region
    $region14: #{model_forward.1} parent=1 // pred_check
      _
    $region15: #{model_forward.1} parent=1 // pred_check_branch
      %33 = sbr.rel (0) target = $region17
    $region16: #{model_forward.1} parent=1 // pred_region
      %34 = dma.done [#allocation3], 16
    $region17: #{model_forward.1} parent=1 // pred_fallthru
      _
    // Predicated region
    $region18: #{model_forward.1} parent=1 // pred_check
      _
    $region19: #{model_forward.1} parent=1 // pred_check_branch
      %36 = sbr.rel (0) target = $region21
    $region20: #{model_forward.1} parent=1 // pred_region
      %37 = dma.done [#allocation5], 16
    $region21: #{model_forward.1} parent=1 // pred_fallthru
      _
    %38 = sfence
    %s39 = sld [smem:[#allocation4]]
    %v40 = vstv %s39
    %s41 = sld [smem:[#allocation4 + $0x1]]
    %v42 = vstv %s41
    %s43 = sld [smem:[#allocation4 + $0x2]]
    %v44 = vstv %s43
    %v45 = vld [vmem:[%s2] sm:$0xf]
    %s46 = sld [smem:[#allocation2]]
    %v47 = vstv %s46
    %v48 = vmul.f32 %v47, %v45
    %v49 = vadd.f32 %v40, %v48
    %s50 = sld [smem:[#allocation2 + $0x1b]]
    %v51 = vstv %s50
    %v52 = vmul.f32 %v51, %v45
    %v53 = vadd.f32 %v42, %v52
    %s54 = sld [smem:[#allocation2 + $0x36]]
    %v55 = vstv %s54
    %v56 = vmul.f32 %v55, %v45
    %v57 = vadd.f32 %v44, %v56
    %v60 = vunpack.c.l.s4 1983009808
    %v61 = vunpack.c.0.s8 %v60
    %v62 = vlaneseq
    %v63 = vshrl.u32 %v62, 7
    %v64 = vsub.s32 %v61, %v63
    %v65 = vrot.slane %v45, %v64
    %v66 = vcombine.high %v65, %v65
    %69 = vrot.lane.b32.xlu0 %v65, 127
    %v70 = vpop.permute.xlu0 %69
    %71 = vrot.lane.b32.xlu0 %v66, 127
    %v72 = vpop.permute.xlu0 %71
    %v73 = vlaneseq
    %v74 = vand.u32 %v73, 127
    %vm75 = vcmp.lt.s32.totalorder %v74, 127
    %v76 = vsel %vm75, %v70, %v72
    %v77 = vsel %vm75, %v72, %v70
    %s78 = sld [smem:[#allocation2 + $0x1]]
    %v79 = vstv %s78
    %v80 = vmul.f32 %v79, %v76
    %v81 = vmul.f32 %v79, %v77
    %v84 = vcombine.low %v80, %v81
    %v86 = vunpack.c.l.s4 1983009808
    %v87 = vunpack.c.0.s8 %v86
    %v88 = vlaneseq
    %v89 = vshrl.u32 %v88, 7
    %v90 = vsub.s32 %v87, %v89
    %v91 = vrot.slane %v84, %v90
    %v93 = vadd.f32 %v49, %v91
    %s94 = sld [smem:[#allocation2 + $0x1c]]
    %v95 = vstv %s94
    %v96 = vmul.f32 %v95, %v76
    %v97 = vmul.f32 %v95, %v77
    %v100 = vcombine.low %v96, %v97
    %v102 = vunpack.c.l.s4 1983009808
    %v103 = vunpack.c.0.s8 %v102
    %v104 = vlaneseq
    %v105 = vshrl.u32 %v104, 7
    %v106 = vsub.s32 %v103, %v105
    %v107 = vrot.slane %v100, %v106
    %v109 = vadd.f32 %v53, %v107
    %s110 = sld [smem:[#allocation2 + $0x37]]
    %v111 = vstv %s110
    %v112 = vmul.f32 %v111, %v76
    %v113 = vmul.f32 %v111, %v77
    %v116 = vcombine.low %v112, %v113
    %v118 = vunpack.c.l.s4 1983009808
    %v119 = vunpack.c.0.s8 %v118
    %v120 = vlaneseq
    %v121 = vshrl.u32 %v120, 7
    %v122 = vsub.s32 %v119, %v121
    %v123 = vrot.slane %v116, %v122
    %v125 = vadd.f32 %v57, %v123
    %126 = vrot.lane.b32.xlu0 %v65, 126
    %v127 = vpop.permute.xlu0 %126
    %128 = vrot.lane.b32.xlu0 %v66, 126
    %v129 = vpop.permute.xlu0 %128
    %vm130 = vcmp.lt.s32.totalorder %v74, 126
    %v131 = vsel %vm130, %v127, %v129
    %v132 = vsel %vm130, %v129, %v127
    %s133 = sld [smem:[#allocation2 + $0x2]]
    %v134 = vstv %s133
    %v135 = vmul.f32 %v134, %v131
    %v136 = vmul.f32 %v134, %v132
    %v139 = vcombine.low %v135, %v136
    %v141 = vunpack.c.l.s4 1983009808
    %v142 = vunpack.c.0.s8 %v141
    %v143 = vlaneseq
    %v144 = vshrl.u32 %v143, 7
    %v145 = vsub.s32 %v142, %v144
    %v146 = vrot.slane %v139, %v145
    %v148 = vadd.f32 %v93, %v146
    %s149 = sld [smem:[#allocation2 + $0x1d]]
    %v150 = vstv %s149
    %v151 = vmul.f32 %v150, %v131
    %v152 = vmul.f32 %v150, %v132
    %v155 = vcombine.low %v151, %v152
    %v157 = vunpack.c.l.s4 1983009808
    %v158 = vunpack.c.0.s8 %v157
    %v159 = vlaneseq
    %v160 = vshrl.u32 %v159, 7
    %v161 = vsub.s32 %v158, %v160
    %v162 = vrot.slane %v155, %v161
    %v164 = vadd.f32 %v109, %v162
    %s165 = sld [smem:[#allocation2 + $0x38]]
    %v166 = vstv %s165
    %v167 = vmul.f32 %v166, %v131
    %v168 = vmul.f32 %v166, %v132
    %v171 = vcombine.low %v167, %v168
    %v173 = vunpack.c.l.s4 1983009808
    %v174 = vunpack.c.0.s8 %v173
    %v175 = vlaneseq
    %v176 = vshrl.u32 %v175, 7
    %v177 = vsub.s32 %v174, %v176
    %v178 = vrot.slane %v171, %v177
    %v180 = vadd.f32 %v125, %v178
    %181 = vrot.lane.b32.xlu0 %v65, 112
    %v182 = vpop.permute.xlu0 %181
    %183 = vrot.lane.b32.xlu0 %v66, 112
    %v184 = vpop.permute.xlu0 %183
    %vm185 = vcmp.lt.s32.totalorder %v74, 112
    %v186 = vsel %vm185, %v182, %v184
    %v187 = vsel %vm185, %v184, %v182
    %s188 = sld [smem:[#allocation2 + $0x3]]
    %v189 = vstv %s188
    %v190 = vmul.f32 %v189, %v186
    %v191 = vmul.f32 %v189, %v187
    %v194 = vcombine.low %v190, %v191
    %v196 = vunpack.c.l.s4 1983009808
    %v197 = vunpack.c.0.s8 %v196
    %v198 = vlaneseq
    %v199 = vshrl.u32 %v198, 7
    %v200 = vsub.s32 %v197, %v199
    %v201 = vrot.slane %v194, %v200
    %v203 = vadd.f32 %v148, %v201
    %s204 = sld [smem:[#allocation2 + $0x1e]]
    %v205 = vstv %s204
    %v206 = vmul.f32 %v205, %v186
    %v207 = vmul.f32 %v205, %v187
    %v210 = vcombine.low %v206, %v207
    %v212 = vunpack.c.l.s4 1983009808
    %v213 = vunpack.c.0.s8 %v212
    %v214 = vlaneseq
    %v215 = vshrl.u32 %v214, 7
    %v216 = vsub.s32 %v213, %v215
    %v217 = vrot.slane %v210, %v216
    %v219 = vadd.f32 %v164, %v217
    %s220 = sld [smem:[#allocation2 + $0x39]]
    %v221 = vstv %s220
    %v222 = vmul.f32 %v221, %v186
    %v223 = vmul.f32 %v221, %v187
    %v226 = vcombine.low %v222, %v223
    %v228 = vunpack.c.l.s4 1983009808
    %v229 = vunpack.c.0.s8 %v228
    %v230 = vlaneseq
    %v231 = vshrl.u32 %v230, 7
    %v232 = vsub.s32 %v229, %v231
    %v233 = vrot.slane %v226, %v232
    %v235 = vadd.f32 %v180, %v233
    %236 = vrot.lane.b32.xlu0 %v65, 111
    %v237 = vpop.permute.xlu0 %236
    %238 = vrot.lane.b32.xlu0 %v66, 111
    %v239 = vpop.permute.xlu0 %238
    %vm240 = vcmp.lt.s32.totalorder %v74, 111
    %v241 = vsel %vm240, %v237, %v239
    %v242 = vsel %vm240, %v239, %v237
    %s243 = sld [smem:[#allocation2 + $0x4]]
    %v244 = vstv %s243
    %v245 = vmul.f32 %v244, %v241
    %v246 = vmul.f32 %v244, %v242
    %v249 = vcombine.low %v245, %v246
    %v251 = vunpack.c.l.s4 1983009808
    %v252 = vunpack.c.0.s8 %v251
    %v253 = vlaneseq
    %v254 = vshrl.u32 %v253, 7
    %v255 = vsub.s32 %v252, %v254
    %v256 = vrot.slane %v249, %v255
    %v258 = vadd.f32 %v203, %v256
    %s259 = sld [smem:[#allocation2 + $0x1f]]
    %v260 = vstv %s259
    %v261 = vmul.f32 %v260, %v241
    %v262 = vmul.f32 %v260, %v242
    %v265 = vcombine.low %v261, %v262
    %v267 = vunpack.c.l.s4 1983009808
    %v268 = vunpack.c.0.s8 %v267
    %v269 = vlaneseq
    %v270 = vshrl.u32 %v269, 7
    %v271 = vsub.s32 %v268, %v270
    %v272 = vrot.slane %v265, %v271
    %v274 = vadd.f32 %v219, %v272
    %s275 = sld [smem:[#allocation2 + $0x3a]]
    %v276 = vstv %s275
    %v277 = vmul.f32 %v276, %v241
    %v278 = vmul.f32 %v276, %v242
    %v281 = vcombine.low %v277, %v278
    %v283 = vunpack.c.l.s4 1983009808
    %v284 = vunpack.c.0.s8 %v283
    %v285 = vlaneseq
    %v286 = vshrl.u32 %v285, 7
    %v287 = vsub.s32 %v284, %v286
    %v288 = vrot.slane %v281, %v287
    %v290 = vadd.f32 %v235, %v288
    %291 = vrot.lane.b32.xlu0 %v65, 110
    %v292 = vpop.permute.xlu0 %291
    %293 = vrot.lane.b32.xlu0 %v66, 110
    %v294 = vpop.permute.xlu0 %293
    %vm295 = vcmp.lt.s32.totalorder %v74, 110
    %v296 = vsel %vm295, %v292, %v294
    %v297 = vsel %vm295, %v294, %v292
    %s298 = sld [smem:[#allocation2 + $0x5]]
    %v299 = vstv %s298
    %v300 = vmul.f32 %v299, %v296
    %v301 = vmul.f32 %v299, %v297
    %v304 = vcombine.low %v300, %v301
    %v306 = vunpack.c.l.s4 1983009808
    %v307 = vunpack.c.0.s8 %v306
    %v308 = vlaneseq
    %v309 = vshrl.u32 %v308, 7
    %v310 = vsub.s32 %v307, %v309
    %v311 = vrot.slane %v304, %v310
    %v313 = vadd.f32 %v258, %v311
    %s314 = sld [smem:[#allocation2 + $0x20]]
    %v315 = vstv %s314
    %v316 = vmul.f32 %v315, %v296
    %v317 = vmul.f32 %v315, %v297
    %v320 = vcombine.low %v316, %v317
    %v322 = vunpack.c.l.s4 1983009808
    %v323 = vunpack.c.0.s8 %v322
    %v324 = vlaneseq
    %v325 = vshrl.u32 %v324, 7
    %v326 = vsub.s32 %v323, %v325
    %v327 = vrot.slane %v320, %v326
    %v329 = vadd.f32 %v274, %v327
    %s330 = sld [smem:[#allocation2 + $0x3b]]
    %v331 = vstv %s330
    %v332 = vmul.f32 %v331, %v296
    %v333 = vmul.f32 %v331, %v297
    %v336 = vcombine.low %v332, %v333
    %v338 = vunpack.c.l.s4 1983009808
    %v339 = vunpack.c.0.s8 %v338
    %v340 = vlaneseq
    %v341 = vshrl.u32 %v340, 7
    %v342 = vsub.s32 %v339, %v341
    %v343 = vrot.slane %v336, %v342
    %v345 = vadd.f32 %v290, %v343
    %346 = vrot.lane.b32.xlu0 %v65, 96
    %v347 = vpop.permute.xlu0 %346
    %348 = vrot.lane.b32.xlu0 %v66, 96
    %v349 = vpop.permute.xlu0 %348
    %vm350 = vcmp.lt.s32.totalorder %v74, 96
    %v351 = vsel %vm350, %v347, %v349
    %v352 = vsel %vm350, %v349, %v347
    %s353 = sld [smem:[#allocation2 + $0x6]]
    %v354 = vstv %s353
    %v355 = vmul.f32 %v354, %v351
    %v356 = vmul.f32 %v354, %v352
    %v359 = vcombine.low %v355, %v356
    %v361 = vunpack.c.l.s4 1983009808
    %v362 = vunpack.c.0.s8 %v361
    %v363 = vlaneseq
    %v364 = vshrl.u32 %v363, 7
    %v365 = vsub.s32 %v362, %v364
    %v366 = vrot.slane %v359, %v365
    %v368 = vadd.f32 %v313, %v366
    %s369 = sld [smem:[#allocation2 + $0x21]]
    %v370 = vstv %s369
    %v371 = vmul.f32 %v370, %v351
    %v372 = vmul.f32 %v370, %v352
    %v375 = vcombine.low %v371, %v372
    %v377 = vunpack.c.l.s4 1983009808
    %v378 = vunpack.c.0.s8 %v377
    %v379 = vlaneseq
    %v380 = vshrl.u32 %v379, 7
    %v381 = vsub.s32 %v378, %v380
    %v382 = vrot.slane %v375, %v381
    %v384 = vadd.f32 %v329, %v382
    %s385 = sld [smem:[#allocation2 + $0x3c]]
    %v386 = vstv %s385
    %v387 = vmul.f32 %v386, %v351
    %v388 = vmul.f32 %v386, %v352
    %v391 = vcombine.low %v387, %v388
    %v393 = vunpack.c.l.s4 1983009808
    %v394 = vunpack.c.0.s8 %v393
    %v395 = vlaneseq
    %v396 = vshrl.u32 %v395, 7
    %v397 = vsub.s32 %v394, %v396
    %v398 = vrot.slane %v391, %v397
    %v400 = vadd.f32 %v345, %v398
    %401 = vrot.lane.b32.xlu0 %v65, 95
    %v402 = vpop.permute.xlu0 %401
    %403 = vrot.lane.b32.xlu0 %v66, 95
    %v404 = vpop.permute.xlu0 %403
    %vm405 = vcmp.lt.s32.totalorder %v74, 95
    %v406 = vsel %vm405, %v402, %v404
    %v407 = vsel %vm405, %v404, %v402
    %s408 = sld [smem:[#allocation2 + $0x7]]
    %v409 = vstv %s408
    %v410 = vmul.f32 %v409, %v406
    %v411 = vmul.f32 %v409, %v407
    %v414 = vcombine.low %v410, %v411
    %v416 = vunpack.c.l.s4 1983009808
    %v417 = vunpack.c.0.s8 %v416
    %v418 = vlaneseq
    %v419 = vshrl.u32 %v418, 7
    %v420 = vsub.s32 %v417, %v419
    %v421 = vrot.slane %v414, %v420
    %v423 = vadd.f32 %v368, %v421
    %s424 = sld [smem:[#allocation2 + $0x22]]
    %v425 = vstv %s424
    %v426 = vmul.f32 %v425, %v406
    %v427 = vmul.f32 %v425, %v407
    %v430 = vcombine.low %v426, %v427
    %v432 = vunpack.c.l.s4 1983009808
    %v433 = vunpack.c.0.s8 %v432
    %v434 = vlaneseq
    %v435 = vshrl.u32 %v434, 7
    %v436 = vsub.s32 %v433, %v435
    %v437 = vrot.slane %v430, %v436
    %v439 = vadd.f32 %v384, %v437
    %s440 = sld [smem:[#allocation2 + $0x3d]]
    %v441 = vstv %s440
    %v442 = vmul.f32 %v441, %v406
    %v443 = vmul.f32 %v441, %v407
    %v446 = vcombine.low %v442, %v443
    %v448 = vunpack.c.l.s4 1983009808
    %v449 = vunpack.c.0.s8 %v448
    %v450 = vlaneseq
    %v451 = vshrl.u32 %v450, 7
    %v452 = vsub.s32 %v449, %v451
    %v453 = vrot.slane %v446, %v452
    %v455 = vadd.f32 %v400, %v453
    %456 = vrot.lane.b32.xlu0 %v65, 94
    %v457 = vpop.permute.xlu0 %456
    %458 = vrot.lane.b32.xlu0 %v66, 94
    %v459 = vpop.permute.xlu0 %458
    %vm460 = vcmp.lt.s32.totalorder %v74, 94
    %v461 = vsel %vm460, %v457, %v459
    %v462 = vsel %vm460, %v459, %v457
    %s463 = sld [smem:[#allocation2 + $0x8]]
    %v464 = vstv %s463
    %v465 = vmul.f32 %v464, %v461
    %v466 = vmul.f32 %v464, %v462
    %v469 = vcombine.low %v465, %v466
    %v471 = vunpack.c.l.s4 1983009808
    %v472 = vunpack.c.0.s8 %v471
    %v473 = vlaneseq
    %v474 = vshrl.u32 %v473, 7
    %v475 = vsub.s32 %v472, %v474
    %v476 = vrot.slane %v469, %v475
    %v478 = vadd.f32 %v423, %v476
    %s479 = sld [smem:[#allocation2 + $0x23]]
    %v480 = vstv %s479
    %v481 = vmul.f32 %v480, %v461
    %v482 = vmul.f32 %v480, %v462
    %v485 = vcombine.low %v481, %v482
    %v487 = vunpack.c.l.s4 1983009808
    %v488 = vunpack.c.0.s8 %v487
    %v489 = vlaneseq
    %v490 = vshrl.u32 %v489, 7
    %v491 = vsub.s32 %v488, %v490
    %v492 = vrot.slane %v485, %v491
    %v494 = vadd.f32 %v439, %v492
    %s495 = sld [smem:[#allocation2 + $0x3e]]
    %v496 = vstv %s495
    %v497 = vmul.f32 %v496, %v461
    %v498 = vmul.f32 %v496, %v462
    %v501 = vcombine.low %v497, %v498
    %v503 = vunpack.c.l.s4 1983009808
    %v504 = vunpack.c.0.s8 %v503
    %v505 = vlaneseq
    %v506 = vshrl.u32 %v505, 7
    %v507 = vsub.s32 %v504, %v506
    %v508 = vrot.slane %v501, %v507
    %v510 = vadd.f32 %v455, %v508
    %s511 = scalar_lea.vmem %s2, 4
    %v512 = vld [vmem:[%s511] sm:$0xf]
    %s513 = sld [smem:[#allocation2 + $0x9]]
    %v514 = vstv %s513
    %v515 = vmul.f32 %v514, %v512
    %v516 = vadd.f32 %v478, %v515
    %s517 = sld [smem:[#allocation2 + $0x24]]
    %v518 = vstv %s517
    %v519 = vmul.f32 %v518, %v512
    %v520 = vadd.f32 %v494, %v519
    %s521 = sld [smem:[#allocation2 + $0x3f]]
    %v522 = vstv %s521
    %v523 = vmul.f32 %v522, %v512
    %v524 = vadd.f32 %v510, %v523
    %v527 = vunpack.c.l.s4 1983009808
    %v528 = vunpack.c.0.s8 %v527
    %v529 = vlaneseq
    %v530 = vshrl.u32 %v529, 7
    %v531 = vsub.s32 %v528, %v530
    %v532 = vrot.slane %v512, %v531
    %v533 = vcombine.high %v532, %v532
    %536 = vrot.lane.b32.xlu0 %v532, 127
    %v537 = vpop.permute.xlu0 %536
    %538 = vrot.lane.b32.xlu0 %v533, 127
    %v539 = vpop.permute.xlu0 %538
    %v540 = vsel %vm75, %v537, %v539
    %v541 = vsel %vm75, %v539, %v537
    %s542 = sld [smem:[#allocation2 + $0xa]]
    %v543 = vstv %s542
    %v544 = vmul.f32 %v543, %v540
    %v545 = vmul.f32 %v543, %v541
    %v548 = vcombine.low %v544, %v545
    %v550 = vunpack.c.l.s4 1983009808
    %v551 = vunpack.c.0.s8 %v550
    %v552 = vlaneseq
    %v553 = vshrl.u32 %v552, 7
    %v554 = vsub.s32 %v551, %v553
    %v555 = vrot.slane %v548, %v554
    %v557 = vadd.f32 %v516, %v555
    %s558 = sld [smem:[#allocation2 + $0x25]]
    %v559 = vstv %s558
    %v560 = vmul.f32 %v559, %v540
    %v561 = vmul.f32 %v559, %v541
    %v564 = vcombine.low %v560, %v561
    %v566 = vunpack.c.l.s4 1983009808
    %v567 = vunpack.c.0.s8 %v566
    %v568 = vlaneseq
    %v569 = vshrl.u32 %v568, 7
    %v570 = vsub.s32 %v567, %v569
    %v571 = vrot.slane %v564, %v570
    %v573 = vadd.f32 %v520, %v571
    %s574 = sld [smem:[#allocation2 + $0x40]]
    %v575 = vstv %s574
    %v576 = vmul.f32 %v575, %v540
    %v577 = vmul.f32 %v575, %v541
    %v580 = vcombine.low %v576, %v577
    %v582 = vunpack.c.l.s4 1983009808
    %v583 = vunpack.c.0.s8 %v582
    %v584 = vlaneseq
    %v585 = vshrl.u32 %v584, 7
    %v586 = vsub.s32 %v583, %v585
    %v587 = vrot.slane %v580, %v586
    %v589 = vadd.f32 %v524, %v587
    %590 = vrot.lane.b32.xlu0 %v532, 126
    %v591 = vpop.permute.xlu0 %590
    %592 = vrot.lane.b32.xlu0 %v533, 126
    %v593 = vpop.permute.xlu0 %592
    %v594 = vsel %vm130, %v591, %v593
    %v595 = vsel %vm130, %v593, %v591
    %s596 = sld [smem:[#allocation2 + $0xb]]
    %v597 = vstv %s596
    %v598 = vmul.f32 %v597, %v594
    %v599 = vmul.f32 %v597, %v595
    %v602 = vcombine.low %v598, %v599
    %v604 = vunpack.c.l.s4 1983009808
    %v605 = vunpack.c.0.s8 %v604
    %v606 = vlaneseq
    %v607 = vshrl.u32 %v606, 7
    %v608 = vsub.s32 %v605, %v607
    %v609 = vrot.slane %v602, %v608
    %v611 = vadd.f32 %v557, %v609
    %s612 = sld [smem:[#allocation2 + $0x26]]
    %v613 = vstv %s612
    %v614 = vmul.f32 %v613, %v594
    %v615 = vmul.f32 %v613, %v595
    %v618 = vcombine.low %v614, %v615
    %v620 = vunpack.c.l.s4 1983009808
    %v621 = vunpack.c.0.s8 %v620
    %v622 = vlaneseq
    %v623 = vshrl.u32 %v622, 7
    %v624 = vsub.s32 %v621, %v623
    %v625 = vrot.slane %v618, %v624
    %v627 = vadd.f32 %v573, %v625
    %s628 = sld [smem:[#allocation2 + $0x41]]
    %v629 = vstv %s628
    %v630 = vmul.f32 %v629, %v594
    %v631 = vmul.f32 %v629, %v595
    %v634 = vcombine.low %v630, %v631
    %v636 = vunpack.c.l.s4 1983009808
    %v637 = vunpack.c.0.s8 %v636
    %v638 = vlaneseq
    %v639 = vshrl.u32 %v638, 7
    %v640 = vsub.s32 %v637, %v639
    %v641 = vrot.slane %v634, %v640
    %v643 = vadd.f32 %v589, %v641
    %644 = vrot.lane.b32.xlu0 %v532, 112
    %v645 = vpop.permute.xlu0 %644
    %646 = vrot.lane.b32.xlu0 %v533, 112
    %v647 = vpop.permute.xlu0 %646
    %v648 = vsel %vm185, %v645, %v647
    %v649 = vsel %vm185, %v647, %v645
    %s650 = sld [smem:[#allocation2 + $0xc]]
    %v651 = vstv %s650
    %v652 = vmul.f32 %v651, %v648
    %v653 = vmul.f32 %v651, %v649
    %v656 = vcombine.low %v652, %v653
    %v658 = vunpack.c.l.s4 1983009808
    %v659 = vunpack.c.0.s8 %v658
    %v660 = vlaneseq
    %v661 = vshrl.u32 %v660, 7
    %v662 = vsub.s32 %v659, %v661
    %v663 = vrot.slane %v656, %v662
    %v665 = vadd.f32 %v611, %v663
    %s666 = sld [smem:[#allocation2 + $0x27]]
    %v667 = vstv %s666
    %v668 = vmul.f32 %v667, %v648
    %v669 = vmul.f32 %v667, %v649
    %v672 = vcombine.low %v668, %v669
    %v674 = vunpack.c.l.s4 1983009808
    %v675 = vunpack.c.0.s8 %v674
    %v676 = vlaneseq
    %v677 = vshrl.u32 %v676, 7
    %v678 = vsub.s32 %v675, %v677
    %v679 = vrot.slane %v672, %v678
    %v681 = vadd.f32 %v627, %v679
    %s682 = sld [smem:[#allocation2 + $0x42]]
    %v683 = vstv %s682
    %v684 = vmul.f32 %v683, %v648
    %v685 = vmul.f32 %v683, %v649
    %v688 = vcombine.low %v684, %v685
    %v690 = vunpack.c.l.s4 1983009808
    %v691 = vunpack.c.0.s8 %v690
    %v692 = vlaneseq
    %v693 = vshrl.u32 %v692, 7
    %v694 = vsub.s32 %v691, %v693
    %v695 = vrot.slane %v688, %v694
    %v697 = vadd.f32 %v643, %v695
    %698 = vrot.lane.b32.xlu0 %v532, 111
    %v699 = vpop.permute.xlu0 %698
    %700 = vrot.lane.b32.xlu0 %v533, 111
    %v701 = vpop.permute.xlu0 %700
    %v702 = vsel %vm240, %v699, %v701
    %v703 = vsel %vm240, %v701, %v699
    %s704 = sld [smem:[#allocation2 + $0xd]]
    %v705 = vstv %s704
    %v706 = vmul.f32 %v705, %v702
    %v707 = vmul.f32 %v705, %v703
    %v710 = vcombine.low %v706, %v707
    %v712 = vunpack.c.l.s4 1983009808
    %v713 = vunpack.c.0.s8 %v712
    %v714 = vlaneseq
    %v715 = vshrl.u32 %v714, 7
    %v716 = vsub.s32 %v713, %v715
    %v717 = vrot.slane %v710, %v716
    %v719 = vadd.f32 %v665, %v717
    %s720 = sld [smem:[#allocation2 + $0x28]]
    %v721 = vstv %s720
    %v722 = vmul.f32 %v721, %v702
    %v723 = vmul.f32 %v721, %v703
    %v726 = vcombine.low %v722, %v723
    %v728 = vunpack.c.l.s4 1983009808
    %v729 = vunpack.c.0.s8 %v728
    %v730 = vlaneseq
    %v731 = vshrl.u32 %v730, 7
    %v732 = vsub.s32 %v729, %v731
    %v733 = vrot.slane %v726, %v732
    %v735 = vadd.f32 %v681, %v733
    %s736 = sld [smem:[#allocation2 + $0x43]]
    %v737 = vstv %s736
    %v738 = vmul.f32 %v737, %v702
    %v739 = vmul.f32 %v737, %v703
    %v742 = vcombine.low %v738, %v739
    %v744 = vunpack.c.l.s4 1983009808
    %v745 = vunpack.c.0.s8 %v744
    %v746 = vlaneseq
    %v747 = vshrl.u32 %v746, 7
    %v748 = vsub.s32 %v745, %v747
    %v749 = vrot.slane %v742, %v748
    %v751 = vadd.f32 %v697, %v749
    %752 = vrot.lane.b32.xlu0 %v532, 110
    %v753 = vpop.permute.xlu0 %752
    %754 = vrot.lane.b32.xlu0 %v533, 110
    %v755 = vpop.permute.xlu0 %754
    %v756 = vsel %vm295, %v753, %v755
    %v757 = vsel %vm295, %v755, %v753
    %s758 = sld [smem:[#allocation2 + $0xe]]
    %v759 = vstv %s758
    %v760 = vmul.f32 %v759, %v756
    %v761 = vmul.f32 %v759, %v757
    %v764 = vcombine.low %v760, %v761
    %v766 = vunpack.c.l.s4 1983009808
    %v767 = vunpack.c.0.s8 %v766
    %v768 = vlaneseq
    %v769 = vshrl.u32 %v768, 7
    %v770 = vsub.s32 %v767, %v769
    %v771 = vrot.slane %v764, %v770
    %v773 = vadd.f32 %v719, %v771
    %s774 = sld [smem:[#allocation2 + $0x29]]
    %v775 = vstv %s774
    %v776 = vmul.f32 %v775, %v756
    %v777 = vmul.f32 %v775, %v757
    %v780 = vcombine.low %v776, %v777
    %v782 = vunpack.c.l.s4 1983009808
    %v783 = vunpack.c.0.s8 %v782
    %v784 = vlaneseq
    %v785 = vshrl.u32 %v784, 7
    %v786 = vsub.s32 %v783, %v785
    %v787 = vrot.slane %v780, %v786
    %v789 = vadd.f32 %v735, %v787
    %s790 = sld [smem:[#allocation2 + $0x44]]
    %v791 = vstv %s790
    %v792 = vmul.f32 %v791, %v756
    %v793 = vmul.f32 %v791, %v757
    %v796 = vcombine.low %v792, %v793
    %v798 = vunpack.c.l.s4 1983009808
    %v799 = vunpack.c.0.s8 %v798
    %v800 = vlaneseq
    %v801 = vshrl.u32 %v800, 7
    %v802 = vsub.s32 %v799, %v801
    %v803 = vrot.slane %v796, %v802
    %v805 = vadd.f32 %v751, %v803
    %806 = vrot.lane.b32.xlu0 %v532, 96
    %v807 = vpop.permute.xlu0 %806
    %808 = vrot.lane.b32.xlu0 %v533, 96
    %v809 = vpop.permute.xlu0 %808
    %v810 = vsel %vm350, %v807, %v809
    %v811 = vsel %vm350, %v809, %v807
    %s812 = sld [smem:[#allocation2 + $0xf]]
    %v813 = vstv %s812
    %v814 = vmul.f32 %v813, %v810
    %v815 = vmul.f32 %v813, %v811
    %v818 = vcombine.low %v814, %v815
    %v820 = vunpack.c.l.s4 1983009808
    %v821 = vunpack.c.0.s8 %v820
    %v822 = vlaneseq
    %v823 = vshrl.u32 %v822, 7
    %v824 = vsub.s32 %v821, %v823
    %v825 = vrot.slane %v818, %v824
    %v827 = vadd.f32 %v773, %v825
    %s828 = sld [smem:[#allocation2 + $0x2a]]
    %v829 = vstv %s828
    %v830 = vmul.f32 %v829, %v810
    %v831 = vmul.f32 %v829, %v811
    %v834 = vcombine.low %v830, %v831
    %v836 = vunpack.c.l.s4 1983009808
    %v837 = vunpack.c.0.s8 %v836
    %v838 = vlaneseq
    %v839 = vshrl.u32 %v838, 7
    %v840 = vsub.s32 %v837, %v839
    %v841 = vrot.slane %v834, %v840
    %v843 = vadd.f32 %v789, %v841
    %s844 = sld [smem:[#allocation2 + $0x45]]
    %v845 = vstv %s844
    %v846 = vmul.f32 %v845, %v810
    %v847 = vmul.f32 %v845, %v811
    %v850 = vcombine.low %v846, %v847
    %v852 = vunpack.c.l.s4 1983009808
    %v853 = vunpack.c.0.s8 %v852
    %v854 = vlaneseq
    %v855 = vshrl.u32 %v854, 7
    %v856 = vsub.s32 %v853, %v855
    %v857 = vrot.slane %v850, %v856
    %v859 = vadd.f32 %v805, %v857
    %860 = vrot.lane.b32.xlu0 %v532, 95
    %v861 = vpop.permute.xlu0 %860
    %862 = vrot.lane.b32.xlu0 %v533, 95
    %v863 = vpop.permute.xlu0 %862
    %v864 = vsel %vm405, %v861, %v863
    %v865 = vsel %vm405, %v863, %v861
    %s866 = sld [smem:[#allocation2 + $0x10]]
    %v867 = vstv %s866
    %v868 = vmul.f32 %v867, %v864
    %v869 = vmul.f32 %v867, %v865
    %v872 = vcombine.low %v868, %v869
    %v874 = vunpack.c.l.s4 1983009808
    %v875 = vunpack.c.0.s8 %v874
    %v876 = vlaneseq
    %v877 = vshrl.u32 %v876, 7
    %v878 = vsub.s32 %v875, %v877
    %v879 = vrot.slane %v872, %v878
    %v881 = vadd.f32 %v827, %v879
    %s882 = sld [smem:[#allocation2 + $0x2b]]
    %v883 = vstv %s882
    %v884 = vmul.f32 %v883, %v864
    %v885 = vmul.f32 %v883, %v865
    %v888 = vcombine.low %v884, %v885
    %v890 = vunpack.c.l.s4 1983009808
    %v891 = vunpack.c.0.s8 %v890
    %v892 = vlaneseq
    %v893 = vshrl.u32 %v892, 7
    %v894 = vsub.s32 %v891, %v893
    %v895 = vrot.slane %v888, %v894
    %v897 = vadd.f32 %v843, %v895
    %s898 = sld [smem:[#allocation2 + $0x46]]
    %v899 = vstv %s898
    %v900 = vmul.f32 %v899, %v864
    %v901 = vmul.f32 %v899, %v865
    %v904 = vcombine.low %v900, %v901
    %v906 = vunpack.c.l.s4 1983009808
    %v907 = vunpack.c.0.s8 %v906
    %v908 = vlaneseq
    %v909 = vshrl.u32 %v908, 7
    %v910 = vsub.s32 %v907, %v909
    %v911 = vrot.slane %v904, %v910
    %v913 = vadd.f32 %v859, %v911
    %914 = vrot.lane.b32.xlu0 %v532, 94
    %v915 = vpop.permute.xlu0 %914
    %916 = vrot.lane.b32.xlu0 %v533, 94
    %v917 = vpop.permute.xlu0 %916
    %v918 = vsel %vm460, %v915, %v917
    %v919 = vsel %vm460, %v917, %v915
    %s920 = sld [smem:[#allocation2 + $0x11]]
    %v921 = vstv %s920
    %v922 = vmul.f32 %v921, %v918
    %v923 = vmul.f32 %v921, %v919
    %v926 = vcombine.low %v922, %v923
    %v928 = vunpack.c.l.s4 1983009808
    %v929 = vunpack.c.0.s8 %v928
    %v930 = vlaneseq
    %v931 = vshrl.u32 %v930, 7
    %v932 = vsub.s32 %v929, %v931
    %v933 = vrot.slane %v926, %v932
    %v935 = vadd.f32 %v881, %v933
    %s936 = sld [smem:[#allocation2 + $0x2c]]
    %v937 = vstv %s936
    %v938 = vmul.f32 %v937, %v918
    %v939 = vmul.f32 %v937, %v919
    %v942 = vcombine.low %v938, %v939
    %v944 = vunpack.c.l.s4 1983009808
    %v945 = vunpack.c.0.s8 %v944
    %v946 = vlaneseq
    %v947 = vshrl.u32 %v946, 7
    %v948 = vsub.s32 %v945, %v947
    %v949 = vrot.slane %v942, %v948
    %v951 = vadd.f32 %v897, %v949
    %s952 = sld [smem:[#allocation2 + $0x47]]
    %v953 = vstv %s952
    %v954 = vmul.f32 %v953, %v918
    %v955 = vmul.f32 %v953, %v919
    %v958 = vcombine.low %v954, %v955
    %v960 = vunpack.c.l.s4 1983009808
    %v961 = vunpack.c.0.s8 %v960
    %v962 = vlaneseq
    %v963 = vshrl.u32 %v962, 7
    %v964 = vsub.s32 %v961, %v963
    %v965 = vrot.slane %v958, %v964
    %v967 = vadd.f32 %v913, %v965
    %s968 = scalar_lea.vmem %s2, 8
    %v969 = vld [vmem:[%s968] sm:$0xf]
    %s970 = sld [smem:[#allocation2 + $0x12]]
    %v971 = vstv %s970
    %v972 = vmul.f32 %v971, %v969
    %v973 = vadd.f32 %v935, %v972
    %s974 = sld [smem:[#allocation2 + $0x2d]]
    %v975 = vstv %s974
    %v976 = vmul.f32 %v975, %v969
    %v977 = vadd.f32 %v951, %v976
    %s978 = sld [smem:[#allocation2 + $0x48]]
    %v979 = vstv %s978
    %v980 = vmul.f32 %v979, %v969
    %v981 = vadd.f32 %v967, %v980
    %v984 = vunpack.c.l.s4 1983009808
    %v985 = vunpack.c.0.s8 %v984
    %v986 = vlaneseq
    %v987 = vshrl.u32 %v986, 7
    %v988 = vsub.s32 %v985, %v987
    %v989 = vrot.slane %v969, %v988
    %v990 = vcombine.high %v989, %v989
    %993 = vrot.lane.b32.xlu0 %v989, 127
    %v994 = vpop.permute.xlu0 %993
    %995 = vrot.lane.b32.xlu0 %v990, 127
    %v996 = vpop.permute.xlu0 %995
    %v997 = vsel %vm75, %v994, %v996
    %v998 = vsel %vm75, %v996, %v994
    %s999 = sld [smem:[#allocation2 + $0x13]]
    %v1000 = vstv %s999
    %v1001 = vmul.f32 %v1000, %v997
    %v1002 = vmul.f32 %v1000, %v998
    %v1005 = vcombine.low %v1001, %v1002
    %v1007 = vunpack.c.l.s4 1983009808
    %v1008 = vunpack.c.0.s8 %v1007
    %v1009 = vlaneseq
    %v1010 = vshrl.u32 %v1009, 7
    %v1011 = vsub.s32 %v1008, %v1010
    %v1012 = vrot.slane %v1005, %v1011
    %v1014 = vadd.f32 %v973, %v1012
    %s1015 = sld [smem:[#allocation2 + $0x2e]]
    %v1016 = vstv %s1015
    %v1017 = vmul.f32 %v1016, %v997
    %v1018 = vmul.f32 %v1016, %v998
    %v1021 = vcombine.low %v1017, %v1018
    %v1023 = vunpack.c.l.s4 1983009808
    %v1024 = vunpack.c.0.s8 %v1023
    %v1025 = vlaneseq
    %v1026 = vshrl.u32 %v1025, 7
    %v1027 = vsub.s32 %v1024, %v1026
    %v1028 = vrot.slane %v1021, %v1027
    %v1030 = vadd.f32 %v977, %v1028
    %s1031 = sld [smem:[#allocation2 + $0x49]]
    %v1032 = vstv %s1031
    %v1033 = vmul.f32 %v1032, %v997
    %v1034 = vmul.f32 %v1032, %v998
    %v1037 = vcombine.low %v1033, %v1034
    %v1039 = vunpack.c.l.s4 1983009808
    %v1040 = vunpack.c.0.s8 %v1039
    %v1041 = vlaneseq
    %v1042 = vshrl.u32 %v1041, 7
    %v1043 = vsub.s32 %v1040, %v1042
    %v1044 = vrot.slane %v1037, %v1043
    %v1046 = vadd.f32 %v981, %v1044
    %1047 = vrot.lane.b32.xlu0 %v989, 126
    %v1048 = vpop.permute.xlu0 %1047
    %1049 = vrot.lane.b32.xlu0 %v990, 126
    %v1050 = vpop.permute.xlu0 %1049
    %v1051 = vsel %vm130, %v1048, %v1050
    %v1052 = vsel %vm130, %v1050, %v1048
    %s1053 = sld [smem:[#allocation2 + $0x14]]
    %v1054 = vstv %s1053
    %v1055 = vmul.f32 %v1054, %v1051
    %v1056 = vmul.f32 %v1054, %v1052
    %v1059 = vcombine.low %v1055, %v1056
    %v1061 = vunpack.c.l.s4 1983009808
    %v1062 = vunpack.c.0.s8 %v1061
    %v1063 = vlaneseq
    %v1064 = vshrl.u32 %v1063, 7
    %v1065 = vsub.s32 %v1062, %v1064
    %v1066 = vrot.slane %v1059, %v1065
    %v1068 = vadd.f32 %v1014, %v1066
    %s1069 = sld [smem:[#allocation2 + $0x2f]]
    %v1070 = vstv %s1069
    %v1071 = vmul.f32 %v1070, %v1051
    %v1072 = vmul.f32 %v1070, %v1052
    %v1075 = vcombine.low %v1071, %v1072
    %v1077 = vunpack.c.l.s4 1983009808
    %v1078 = vunpack.c.0.s8 %v1077
    %v1079 = vlaneseq
    %v1080 = vshrl.u32 %v1079, 7
    %v1081 = vsub.s32 %v1078, %v1080
    %v1082 = vrot.slane %v1075, %v1081
    %v1084 = vadd.f32 %v1030, %v1082
    %s1085 = sld [smem:[#allocation2 + $0x4a]]
    %v1086 = vstv %s1085
    %v1087 = vmul.f32 %v1086, %v1051
    %v1088 = vmul.f32 %v1086, %v1052
    %v1091 = vcombine.low %v1087, %v1088
    %v1093 = vunpack.c.l.s4 1983009808
    %v1094 = vunpack.c.0.s8 %v1093
    %v1095 = vlaneseq
    %v1096 = vshrl.u32 %v1095, 7
    %v1097 = vsub.s32 %v1094, %v1096
    %v1098 = vrot.slane %v1091, %v1097
    %v1100 = vadd.f32 %v1046, %v1098
    %1101 = vrot.lane.b32.xlu0 %v989, 112
    %v1102 = vpop.permute.xlu0 %1101
    %1103 = vrot.lane.b32.xlu0 %v990, 112
    %v1104 = vpop.permute.xlu0 %1103
    %v1105 = vsel %vm185, %v1102, %v1104
    %v1106 = vsel %vm185, %v1104, %v1102
    %s1107 = sld [smem:[#allocation2 + $0x15]]
    %v1108 = vstv %s1107
    %v1109 = vmul.f32 %v1108, %v1105
    %v1110 = vmul.f32 %v1108, %v1106
    %v1113 = vcombine.low %v1109, %v1110
    %v1115 = vunpack.c.l.s4 1983009808
    %v1116 = vunpack.c.0.s8 %v1115
    %v1117 = vlaneseq
    %v1118 = vshrl.u32 %v1117, 7
    %v1119 = vsub.s32 %v1116, %v1118
    %v1120 = vrot.slane %v1113, %v1119
    %v1122 = vadd.f32 %v1068, %v1120
    %s1123 = sld [smem:[#allocation2 + $0x30]]
    %v1124 = vstv %s1123
    %v1125 = vmul.f32 %v1124, %v1105
    %v1126 = vmul.f32 %v1124, %v1106
    %v1129 = vcombine.low %v1125, %v1126
    %v1131 = vunpack.c.l.s4 1983009808
    %v1132 = vunpack.c.0.s8 %v1131
    %v1133 = vlaneseq
    %v1134 = vshrl.u32 %v1133, 7
    %v1135 = vsub.s32 %v1132, %v1134
    %v1136 = vrot.slane %v1129, %v1135
    %v1138 = vadd.f32 %v1084, %v1136
    %s1139 = sld [smem:[#allocation2 + $0x4b]]
    %v1140 = vstv %s1139
    %v1141 = vmul.f32 %v1140, %v1105
    %v1142 = vmul.f32 %v1140, %v1106
    %v1145 = vcombine.low %v1141, %v1142
    %v1147 = vunpack.c.l.s4 1983009808
    %v1148 = vunpack.c.0.s8 %v1147
    %v1149 = vlaneseq
    %v1150 = vshrl.u32 %v1149, 7
    %v1151 = vsub.s32 %v1148, %v1150
    %v1152 = vrot.slane %v1145, %v1151
    %v1154 = vadd.f32 %v1100, %v1152
    %1155 = vrot.lane.b32.xlu0 %v989, 111
    %v1156 = vpop.permute.xlu0 %1155
    %1157 = vrot.lane.b32.xlu0 %v990, 111
    %v1158 = vpop.permute.xlu0 %1157
    %v1159 = vsel %vm240, %v1156, %v1158
    %v1160 = vsel %vm240, %v1158, %v1156
    %s1161 = sld [smem:[#allocation2 + $0x16]]
    %v1162 = vstv %s1161
    %v1163 = vmul.f32 %v1162, %v1159
    %v1164 = vmul.f32 %v1162, %v1160
    %v1167 = vcombine.low %v1163, %v1164
    %v1169 = vunpack.c.l.s4 1983009808
    %v1170 = vunpack.c.0.s8 %v1169
    %v1171 = vlaneseq
    %v1172 = vshrl.u32 %v1171, 7
    %v1173 = vsub.s32 %v1170, %v1172
    %v1174 = vrot.slane %v1167, %v1173
    %v1176 = vadd.f32 %v1122, %v1174
    %s1177 = sld [smem:[#allocation2 + $0x31]]
    %v1178 = vstv %s1177
    %v1179 = vmul.f32 %v1178, %v1159
    %v1180 = vmul.f32 %v1178, %v1160
    %v1183 = vcombine.low %v1179, %v1180
    %v1185 = vunpack.c.l.s4 1983009808
    %v1186 = vunpack.c.0.s8 %v1185
    %v1187 = vlaneseq
    %v1188 = vshrl.u32 %v1187, 7
    %v1189 = vsub.s32 %v1186, %v1188
    %v1190 = vrot.slane %v1183, %v1189
    %v1192 = vadd.f32 %v1138, %v1190
    %s1193 = sld [smem:[#allocation2 + $0x4c]]
    %v1194 = vstv %s1193
    %v1195 = vmul.f32 %v1194, %v1159
    %v1196 = vmul.f32 %v1194, %v1160
    %v1199 = vcombine.low %v1195, %v1196
    %v1201 = vunpack.c.l.s4 1983009808
    %v1202 = vunpack.c.0.s8 %v1201
    %v1203 = vlaneseq
    %v1204 = vshrl.u32 %v1203, 7
    %v1205 = vsub.s32 %v1202, %v1204
    %v1206 = vrot.slane %v1199, %v1205
    %v1208 = vadd.f32 %v1154, %v1206
    %1209 = vrot.lane.b32.xlu0 %v989, 110
    %v1210 = vpop.permute.xlu0 %1209
    %1211 = vrot.lane.b32.xlu0 %v990, 110
    %v1212 = vpop.permute.xlu0 %1211
    %v1213 = vsel %vm295, %v1210, %v1212
    %v1214 = vsel %vm295, %v1212, %v1210
    %s1215 = sld [smem:[#allocation2 + $0x17]]
    %v1216 = vstv %s1215
    %v1217 = vmul.f32 %v1216, %v1213
    %v1218 = vmul.f32 %v1216, %v1214
    %v1221 = vcombine.low %v1217, %v1218
    %v1223 = vunpack.c.l.s4 1983009808
    %v1224 = vunpack.c.0.s8 %v1223
    %v1225 = vlaneseq
    %v1226 = vshrl.u32 %v1225, 7
    %v1227 = vsub.s32 %v1224, %v1226
    %v1228 = vrot.slane %v1221, %v1227
    %v1230 = vadd.f32 %v1176, %v1228
    %s1231 = sld [smem:[#allocation2 + $0x32]]
    %v1232 = vstv %s1231
    %v1233 = vmul.f32 %v1232, %v1213
    %v1234 = vmul.f32 %v1232, %v1214
    %v1237 = vcombine.low %v1233, %v1234
    %v1239 = vunpack.c.l.s4 1983009808
    %v1240 = vunpack.c.0.s8 %v1239
    %v1241 = vlaneseq
    %v1242 = vshrl.u32 %v1241, 7
    %v1243 = vsub.s32 %v1240, %v1242
    %v1244 = vrot.slane %v1237, %v1243
    %v1246 = vadd.f32 %v1192, %v1244
    %s1247 = sld [smem:[#allocation2 + $0x4d]]
    %v1248 = vstv %s1247
    %v1249 = vmul.f32 %v1248, %v1213
    %v1250 = vmul.f32 %v1248, %v1214
    %v1253 = vcombine.low %v1249, %v1250
    %v1255 = vunpack.c.l.s4 1983009808
    %v1256 = vunpack.c.0.s8 %v1255
    %v1257 = vlaneseq
    %v1258 = vshrl.u32 %v1257, 7
    %v1259 = vsub.s32 %v1256, %v1258
    %v1260 = vrot.slane %v1253, %v1259
    %v1262 = vadd.f32 %v1208, %v1260
    %1263 = vrot.lane.b32.xlu0 %v989, 96
    %v1264 = vpop.permute.xlu0 %1263
    %1265 = vrot.lane.b32.xlu0 %v990, 96
    %v1266 = vpop.permute.xlu0 %1265
    %v1267 = vsel %vm350, %v1264, %v1266
    %v1268 = vsel %vm350, %v1266, %v1264
    %s1269 = sld [smem:[#allocation2 + $0x18]]
    %v1270 = vstv %s1269
    %v1271 = vmul.f32 %v1270, %v1267
    %v1272 = vmul.f32 %v1270, %v1268
    %v1275 = vcombine.low %v1271, %v1272
    %v1277 = vunpack.c.l.s4 1983009808
    %v1278 = vunpack.c.0.s8 %v1277
    %v1279 = vlaneseq
    %v1280 = vshrl.u32 %v1279, 7
    %v1281 = vsub.s32 %v1278, %v1280
    %v1282 = vrot.slane %v1275, %v1281
    %v1284 = vadd.f32 %v1230, %v1282
    %s1285 = sld [smem:[#allocation2 + $0x33]]
    %v1286 = vstv %s1285
    %v1287 = vmul.f32 %v1286, %v1267
    %v1288 = vmul.f32 %v1286, %v1268
    %v1291 = vcombine.low %v1287, %v1288
    %v1293 = vunpack.c.l.s4 1983009808
    %v1294 = vunpack.c.0.s8 %v1293
    %v1295 = vlaneseq
    %v1296 = vshrl.u32 %v1295, 7
    %v1297 = vsub.s32 %v1294, %v1296
    %v1298 = vrot.slane %v1291, %v1297
    %v1300 = vadd.f32 %v1246, %v1298
    %s1301 = sld [smem:[#allocation2 + $0x4e]]
    %v1302 = vstv %s1301
    %v1303 = vmul.f32 %v1302, %v1267
    %v1304 = vmul.f32 %v1302, %v1268
    %v1307 = vcombine.low %v1303, %v1304
    %v1309 = vunpack.c.l.s4 1983009808
    %v1310 = vunpack.c.0.s8 %v1309
    %v1311 = vlaneseq
    %v1312 = vshrl.u32 %v1311, 7
    %v1313 = vsub.s32 %v1310, %v1312
    %v1314 = vrot.slane %v1307, %v1313
    %v1316 = vadd.f32 %v1262, %v1314
    %1317 = vrot.lane.b32.xlu0 %v989, 95
    %v1318 = vpop.permute.xlu0 %1317
    %1319 = vrot.lane.b32.xlu0 %v990, 95
    %v1320 = vpop.permute.xlu0 %1319
    %v1321 = vsel %vm405, %v1318, %v1320
    %v1322 = vsel %vm405, %v1320, %v1318
    %s1323 = sld [smem:[#allocation2 + $0x19]]
    %v1324 = vstv %s1323
    %v1325 = vmul.f32 %v1324, %v1321
    %v1326 = vmul.f32 %v1324, %v1322
    %v1329 = vcombine.low %v1325, %v1326
    %v1331 = vunpack.c.l.s4 1983009808
    %v1332 = vunpack.c.0.s8 %v1331
    %v1333 = vlaneseq
    %v1334 = vshrl.u32 %v1333, 7
    %v1335 = vsub.s32 %v1332, %v1334
    %v1336 = vrot.slane %v1329, %v1335
    %v1338 = vadd.f32 %v1284, %v1336
    %s1339 = sld [smem:[#allocation2 + $0x34]]
    %v1340 = vstv %s1339
    %v1341 = vmul.f32 %v1340, %v1321
    %v1342 = vmul.f32 %v1340, %v1322
    %v1345 = vcombine.low %v1341, %v1342
    %v1347 = vunpack.c.l.s4 1983009808
    %v1348 = vunpack.c.0.s8 %v1347
    %v1349 = vlaneseq
    %v1350 = vshrl.u32 %v1349, 7
    %v1351 = vsub.s32 %v1348, %v1350
    %v1352 = vrot.slane %v1345, %v1351
    %v1354 = vadd.f32 %v1300, %v1352
    %s1355 = sld [smem:[#allocation2 + $0x4f]]
    %v1356 = vstv %s1355
    %v1357 = vmul.f32 %v1356, %v1321
    %v1358 = vmul.f32 %v1356, %v1322
    %v1361 = vcombine.low %v1357, %v1358
    %v1363 = vunpack.c.l.s4 1983009808
    %v1364 = vunpack.c.0.s8 %v1363
    %v1365 = vlaneseq
    %v1366 = vshrl.u32 %v1365, 7
    %v1367 = vsub.s32 %v1364, %v1366
    %v1368 = vrot.slane %v1361, %v1367
    %v1370 = vadd.f32 %v1316, %v1368
    %1371 = vrot.lane.b32.xlu0 %v989, 94
    %v1372 = vpop.permute.xlu0 %1371
    %1373 = vrot.lane.b32.xlu0 %v990, 94
    %v1374 = vpop.permute.xlu0 %1373
    %v1375 = vsel %vm460, %v1372, %v1374
    %v1376 = vsel %vm460, %v1374, %v1372
    %s1377 = sld [smem:[#allocation2 + $0x1a]]
    %v1378 = vstv %s1377
    %v1379 = vmul.f32 %v1378, %v1375
    %v1380 = vmul.f32 %v1378, %v1376
    %v1383 = vcombine.low %v1379, %v1380
    %v1385 = vunpack.c.l.s4 1983009808
    %v1386 = vunpack.c.0.s8 %v1385
    %v1387 = vlaneseq
    %v1388 = vshrl.u32 %v1387, 7
    %v1389 = vsub.s32 %v1386, %v1388
    %v1390 = vrot.slane %v1383, %v1389
    %v1392 = vadd.f32 %v1338, %v1390
    %s1393 = sld [smem:[#allocation2 + $0x35]]
    %v1394 = vstv %s1393
    %v1395 = vmul.f32 %v1394, %v1375
    %v1396 = vmul.f32 %v1394, %v1376
    %v1399 = vcombine.low %v1395, %v1396
    %v1401 = vunpack.c.l.s4 1983009808
    %v1402 = vunpack.c.0.s8 %v1401
    %v1403 = vlaneseq
    %v1404 = vshrl.u32 %v1403, 7
    %v1405 = vsub.s32 %v1402, %v1404
    %v1406 = vrot.slane %v1399, %v1405
    %v1408 = vadd.f32 %v1354, %v1406
    %s1409 = sld [smem:[#allocation2 + $0x50]]
    %v1410 = vstv %s1409
    %v1411 = vmul.f32 %v1410, %v1375
    %v1412 = vmul.f32 %v1410, %v1376
    %v1415 = vcombine.low %v1411, %v1412
    %v1417 = vunpack.c.l.s4 1983009808
    %v1418 = vunpack.c.0.s8 %v1417
    %v1419 = vlaneseq
    %v1420 = vshrl.u32 %v1419, 7
    %v1421 = vsub.s32 %v1418, %v1420
    %v1422 = vrot.slane %v1415, %v1421
    %v1424 = vadd.f32 %v1370, %v1422
    %1425 = vst [vmem:[%s3] sm:$0xf] %v1392
    %s1426 = scalar_lea.vmem %s3, 4
    %1427 = vst [vmem:[%s1426] sm:$0xf] %v1408
    %s1428 = scalar_lea.vmem %s3, 8
    %1429 = vst [vmem:[%s1428] sm:$0xf] %v1424
    // Predicated region
    $region22: #{model_forward.1} parent=1 // pred_check
      _
    $region23: #{model_forward.1} parent=1 // pred_check_branch
      %1431 = sbr.rel (0) target = $region25
    $region24: #{model_forward.1} parent=1 // pred_region
      _
    $region25: #{model_forward.1} parent=1 // pred_fallthru
      _
    // Predicated region
    $region26: #{model_forward.1} parent=1 // pred_check
      _
    $region27: #{model_forward.1} parent=1 // pred_check_branch
      %1433 = sbr.rel (0) target = $region29
    $region28: #{model_forward.1} parent=1 // pred_region
      _
    $region29: #{model_forward.1} parent=1 // pred_fallthru
      _
    %1434 = vsyncpa [#allocation3], 1
    %1435 = vsyncpa [#allocation5], 1

</llo_original>
